<compile_context>
chip_gen: v5e
topology: v5e:2x2
jax: 0.10.0
libtpu: 0.0.40
codegen_flags: <defaults>
</compile_context>

<pallas_src>
from math import sqrt

import numpy as np
import jax
import jax.numpy as jnp
from jax.experimental import pallas as pl
from jax.experimental.pallas import tpu as pltpu

_HALO = 128          # lane-aligned halo on each side of a T tile
_NEG_SLOPE = 0.4


def _round_up(x, m):
    return -(-x // m) * m


# ---------------------------------------------------------------------------
# Pallas kernel (specialized per static configuration)
# ---------------------------------------------------------------------------
def _make_kernel(t_tile, t_true, mxu_dtype):
    w_win = t_tile + 2 * _HALO

    def kernel(xl_ref, xc_ref, xr_ref, w1_ref, w2_ref, w3_ref, out_ref):
        # xl/xc/xr : (1, Cin_p, 128 / T_tile / 128)  halo-extended input pieces
        # w*       : (Cout_p, 3*Cin_p + 1)  tap-fused block-diag weights + bias col
        # out_ref  : (1, n_mels_p, T_tile)
        t = pl.program_id(1)

        # Halo-extended window (Cin_p, W); all lane offsets are 128-aligned.
        x = jnp.concatenate([xl_ref[0], xc_ref[0], xr_ref[0]], axis=1)

        # {0,1} validity mask over the window: 1 inside the true signal [0, T).
        # It makes layer k+1 see zeros at the true signal boundaries (PyTorch
        # padding=1 semantics); interior tile boundaries are covered by halos.
        g0 = t * t_tile - _HALO
        col = jax.lax.broadcasted_iota(jnp.int32, (1, w_win), 1) + g0
        valid = jnp.logical_and(col >= 0, col < t_true).astype(jnp.float32)

        ones = jnp.ones((1, w_win), jnp.float32)          # bias row (hoisted)

        def conv_lrelu(h, w_ref):
            # Conv1d(k=3) + bias + leaky_relu(0.4) as a single MXU matmul on
            # the tap-stacked window [h[t-1]; h[t]; h[t+1]; ones].
            z = jnp.zeros((h.shape[0], 1), jnp.float32)
            prev = jnp.concatenate([z, h[:, :-1]], axis=1)     # h[:, j-1]
            nxt = jnp.concatenate([h[:, 1:], z], axis=1)       # h[:, j+1]
            x3 = jnp.concatenate([prev, h, nxt, ones], axis=0)
            y = jnp.dot(w_ref[...], x3.astype(mxu_dtype),
                        preferred_element_type=jnp.float32)
            return jnp.maximum(y, _NEG_SLOPE * y)              # leaky-relu

        h1 = conv_lrelu(x, w1_ref) * valid                     # (48, W)
        h2 = conv_lrelu(h1, w2_ref) * valid                    # (80, W) == [g; v]
        h3 = conv_lrelu(h2, w3_ref)                            # (n_mels_p, W)
        out_ref[0] = h3[:, _HALO:_HALO + t_tile].astype(out_ref.dtype)

    return kernel


# ---------------------------------------------------------------------------
# Wrapper: flag-dependent channel concat, channel/time padding, block-diagonal
# tap-fusion of the conv weights (bias folded), T-tiled pallas_call.
# ---------------------------------------------------------------------------
def binaural_prenet_forward(params, geowarp, view, mono, mean_condition, *,
                            addmono=False, use_mean_condition=False,
                            t_tile=1024, use_bf16_mxu=False,
                            out_dtype=jnp.float32):
    # ---- flag-dependent geowarp channel concat (mirrors the PyTorch forward)
    if addmono:
        parts = [geowarp, mono] + ([mean_condition] if use_mean_condition else [])
    else:
        parts = [geowarp] + ([mean_condition] if use_mean_condition else [])
    geo = jnp.concatenate(parts, axis=1).astype(jnp.float32)   # (N, c_dsp, T)
    view = view.astype(jnp.float32)                            # (N, 7, T)

    N, c_dsp, T = geo.shape
    c_view = view.shape[1]
    n_mels = params["conv"]["w"].shape[0]

    c_dsp_p, c_view_p = 8, 8
    assert c_dsp <= c_dsp_p and c_view <= c_view_p
    c_in_p = c_dsp_p + c_view_p                   # 16
    h1_p = _round_up(20, 8)                       # 24
    h2_p = 40
    n_mels_p = _round_up(n_mels, 8)

    # ---- T tile (multiple of 128, clamped to the signal length)
    t_tile = max(_HALO, _round_up(min(t_tile, _round_up(T, _HALO)), _HALO))
    n_t = -(-T // t_tile)
    t_round = n_t * t_tile

    # ---- combined, channel-padded, halo-padded input: (N, 16, (n_t+2)*t_tile)
    x = jnp.concatenate([
        jnp.pad(geo, ((0, 0), (0, c_dsp_p - c_dsp), (0, 0))),
        jnp.pad(view, ((0, 0), (0, c_view_p - c_view), (0, 0))),
    ], axis=1)
    x = jnp.pad(x, ((0, 0), (0, 0), (t_tile, t_tile + (t_round - T))))

    mxu_dtype = jnp.bfloat16 if use_bf16_mxu else jnp.float32

    # ---- fused weights -----------------------------------------------------
    def pad_w(w, cout_p, cin_p):
        cout, cin, _ = w.shape
        return jnp.pad(w.astype(jnp.float32),
                       ((0, cout_p - cout), (0, cin_p - cin), (0, 0)))

    def pad_b(b, cout_p):
        return jnp.pad(b.astype(jnp.float32), (0, cout_p - b.shape[0]))

    def block_diag_w(w_top, w_bot, cout_tp, cout_bp, cin_tp, cin_bp):
        top = pad_w(w_top, cout_tp, cin_tp)
        bot = pad_w(w_bot, cout_bp, cin_bp)
        z_tr = jnp.zeros((cout_tp, cin_bp, 3), jnp.float32)
        z_bl = jnp.zeros((cout_bp, cin_tp, 3), jnp.float32)
        return jnp.concatenate([jnp.concatenate([top, z_tr], axis=1),
                                jnp.concatenate([z_bl, bot], axis=1)], axis=0)

    def fuse(w3d, b):
        # (Cout, Cin, 3) + (Cout,) -> (Cout, 3*Cin + 1); column block k holds
        # tap k (k=0 -> x[t-1]), last column is the folded bias.
        cout = w3d.shape[0]
        w2d = jnp.transpose(w3d, (0, 2, 1)).reshape(cout, -1)
        return jnp.concatenate([w2d, b[:, None]], axis=1).astype(mxu_dtype)

    w1 = fuse(block_diag_w(params["conv_dsp1"]["w"], params["conv_view1"]["w"],
                           h1_p, h1_p, c_dsp_p, c_view_p),
              jnp.concatenate([pad_b(params["conv_dsp1"]["b"], h1_p),
                               pad_b(params["conv_view1"]["b"], h1_p)]))
    w2 = fuse(block_diag_w(params["conv_dsp2"]["w"], params["conv_view2"]["w"],
                           h2_p, h2_p, h1_p, h1_p),
              jnp.concatenate([pad_b(params["conv_dsp2"]["b"], h2_p),
                               pad_b(params["conv_view2"]["b"], h2_p)]))
    w3 = fuse(pad_w(params["conv"]["w"], n_mels_p, 2 * h2_p),
              pad_b(params["conv"]["b"], n_mels_p))

    # ---- specs -------------------------------------------------------------
    tb = t_tile // _HALO

    def _const_spec(a):
        nd = a.ndim
        return pl.BlockSpec(a.shape, lambda n, t, _nd=nd: (0,) * _nd)

    in_specs = [
        # left halo: last 128 lanes of the previous tile (zero-pad tile at t=0)
        pl.BlockSpec((1, c_in_p, _HALO), lambda n, t: (n, 0, (t + 1) * tb - 1)),
        # center tile
        pl.BlockSpec((1, c_in_p, t_tile), lambda n, t: (n, 0, t + 1)),
        # right halo: first 128 lanes of the next tile
        pl.BlockSpec((1, c_in_p, _HALO), lambda n, t: (n, 0, (t + 2) * tb)),
        _const_spec(w1), _const_spec(w2), _const_spec(w3),
    ]
    out_specs = pl.BlockSpec((1, n_mels_p, t_tile), lambda n, t: (n, 0, t))

    # ---- rough per-step VMEM estimate -> scoped-VMEM limit ------------------
    w_win = t_tile + 2 * _HALO
    rows_live = (c_in_p + (3 * c_in_p + 1) + 2 * h1_p + (6 * h1_p + 1)
                 + 2 * h2_p + (6 * h2_p + 1) + n_mels_p)
    est = 4 * w_win * rows_live + 8 * t_tile * (c_in_p + n_mels_p) + (1 << 20)
    vmem_limit = int(min(64 << 20, max(32 << 20, 2 * est)))

    out = pl.pallas_call(
        _make_kernel(t_tile, T, mxu_dtype),
        out_shape=jax.ShapeDtypeStruct((N, n_mels_p, t_round), out_dtype),
        grid=(N, n_t),
        in_specs=in_specs,
        out_specs=out_specs,
        compiler_params=pltpu.CompilerParams(
            dimension_semantics=("parallel", "parallel"),
            vmem_limit_bytes=vmem_limit),
    )(x, x, x, w1, w2, w3)

    return out[:, :n_mels, :T]


# ---------------------------------------------------------------------------
# Deterministic parameter init (PyTorch Conv1d shapes / uniform fan-in bound)
# ---------------------------------------------------------------------------
def _conv_params(key, cout, cin, k=3):
    kw, kb = jax.random.split(key)
    bound = 1.0 / sqrt(cin * k)
    return {
        "w": jax.random.uniform(kw, (cout, cin, k), jnp.float32, -bound, bound),
        "b": jax.random.uniform(kb, (cout,), jnp.float32, -bound, bound),
    }


def init_params(key, n_mels, *, addmono=False, use_mean_condition=False):
    if addmono:
        c_dsp_in = 3 + (1 if use_mean_condition else 0)
    else:
        c_dsp_in = 3 if use_mean_condition else 2
    k1, k2, k3, k4, k5 = jax.random.split(key, 5)
    return {
        "conv_view1": _conv_params(k1, 20, 7),
        "conv_view2": _conv_params(k2, 40, 20),
        "conv_dsp1": _conv_params(k3, 20, c_dsp_in),
        "conv_dsp2": _conv_params(k4, 40, 20),
        "conv": _conv_params(k5, n_mels, 80),
    }


# ---------------------------------------------------------------------------
# Pure-JAX reference (mirrors the PyTorch forward) for correctness checking
# ---------------------------------------------------------------------------
def _conv1d_ref(x, w, b):
    y = jax.lax.conv_general_dilated(
        x, w, window_strides=(1,), padding=((1, 1),),
        dimension_numbers=("NCH", "OIH", "NCH"))
    return y + b[None, :, None]


def forward_ref(params, geowarp, view, mono, mean_condition,
                *, addmono=False, use_mean_condition=False):
    if addmono:
        parts = [geowarp, mono] + ([mean_condition] if use_mean_condition else [])
    else:
        parts = [geowarp] + ([mean_condition] if use_mean_condition else [])
    geo = jnp.concatenate(parts, axis=1)
    lr = lambda x: jnp.where(x > 0, x, 0.4 * x)
    g = lr(_conv1d_ref(geo, params["conv_dsp1"]["w"], params["conv_dsp1"]["b"]))
    g = lr(_conv1d_ref(g, params["conv_dsp2"]["w"], params["conv_dsp2"]["b"]))
    v = lr(_conv1d_ref(view, params["conv_view1"]["w"], params["conv_view1"]["b"]))
    v = lr(_conv1d_ref(v, params["conv_view2"]["w"], params["conv_view2"]["b"]))
    x = jnp.concatenate([g, v], axis=1)
    return lr(_conv1d_ref(x, params["conv"]["w"], params["conv"]["b"]))


# ---------------------------------------------------------------------------
if __name__ == "__main__":
    key = jax.random.PRNGKey(0)
    kp, kg, kv, km, kc = jax.random.split(key, 5)

    # Small shapes; T=400 and t_tile=128 exercise multiple T tiles, interior
    # halos and the true-boundary masking; n_mels=30 exercises n_mels padding.
    N, T, n_mels = 2, 400, 30
    params = init_params(kp, n_mels)                                # default flags
    geowarp = jax.random.normal(kg, (N, 2, T), jnp.float32)         # (N, 2, T)
    view = jax.random.normal(kv, (N, 7, T), jnp.float32)            # (N, 7, T)
    mono = jax.random.normal(km, (N, 1, T), jnp.float32)            # unused (addmono=False)
    mean_condition = jax.random.normal(kc, (N, 1, T), jnp.float32)  # unused

    ref = forward_ref(params, geowarp, view, mono, mean_condition)

    # f32 MXU path: tight check.
    out = binaural_prenet_forward(params, geowarp, view, mono, mean_condition,
                                  t_tile=128, use_bf16_mxu=False)
    out = jax.block_until_ready(out)
    np.testing.assert_allclose(np.asarray(out), np.asarray(ref),
                               rtol=1e-3, atol=1e-3)

    # bf16 MXU operands (v6e/v7x fast path), f32 accumulation: looser check.
    out_bf16 = binaural_prenet_forward(params, geowarp, view, mono,
                                       mean_condition, t_tile=256,
                                       use_bf16_mxu=True)
    out_bf16 = jax.block_until_ready(out_bf16)
    np.testing.assert_allclose(np.asarray(out_bf16), np.asarray(ref),
                               rtol=5e-2, atol=5e-2)

    print("KERNEL_OK")
</pallas_src>

<mosaic_0001>
module attributes {stable_mosaic.version = 11 : i64} {
  func.func @kernel(%arg0: i32, %arg1: i32, %arg2: memref<1x16x128xf32, #tpu.memory_space<vmem>>, %arg3: memref<1x16x128xf32, #tpu.memory_space<vmem>>, %arg4: memref<1x16x128xf32, #tpu.memory_space<vmem>>, %arg5: memref<48x49xf32, #tpu.memory_space<vmem>>, %arg6: memref<80x145xf32, #tpu.memory_space<vmem>>, %arg7: memref<32x241xf32, #tpu.memory_space<vmem>>, %arg8: memref<1x32x128xf32, #tpu.memory_space<vmem>>) attributes {dimension_semantics = [#tpu.dimension_semantics<parallel>, #tpu.dimension_semantics<parallel>], iteration_bounds = array<i64: 2, 4>, scalar_prefetch = 0 : i64, scratch_operands = 0 : i64, tpu.core_type = #tpu.core_type<tc>, window_params = [{transform_indices = @transform_0, window_bounds = array<i64: 1, 16, 128>}, {transform_indices = @transform_1, window_bounds = array<i64: 1, 16, 128>}, {transform_indices = @transform_2, window_bounds = array<i64: 1, 16, 128>}, {pipeline_mode = #tpu.pipeline_mode<synchronous>, transform_indices = @transform_3, window_bounds = array<i64: 48, 49>}, {pipeline_mode = #tpu.pipeline_mode<synchronous>, transform_indices = @transform_4, window_bounds = array<i64: 80, 145>}, {pipeline_mode = #tpu.pipeline_mode<synchronous>, transform_indices = @transform_5, window_bounds = array<i64: 32, 241>}, {transform_indices = @transform_6, window_bounds = array<i64: 1, 32, 128>}]} {
    %c0 = arith.constant 0 : index
    %c0_0 = arith.constant 0 : index
    %c0_1 = arith.constant 0 : index
    %0 = vector.load %arg2[%c0, %c0_0, %c0_1] : memref<1x16x128xf32, #tpu.memory_space<vmem>>, vector<1x16x128xf32>
    %1 = vector.shape_cast %0 : vector<1x16x128xf32> to vector<16x128xf32>
    %c0_2 = arith.constant 0 : index
    %c0_3 = arith.constant 0 : index
    %c0_4 = arith.constant 0 : index
    %2 = vector.load %arg3[%c0_2, %c0_3, %c0_4] : memref<1x16x128xf32, #tpu.memory_space<vmem>>, vector<1x16x128xf32>
    %3 = vector.shape_cast %2 : vector<1x16x128xf32> to vector<16x128xf32>
    %c0_5 = arith.constant 0 : index
    %c0_6 = arith.constant 0 : index
    %c0_7 = arith.constant 0 : index
    %4 = vector.load %arg4[%c0_5, %c0_6, %c0_7] : memref<1x16x128xf32, #tpu.memory_space<vmem>>, vector<1x16x128xf32>
    %5 = vector.shape_cast %4 : vector<1x16x128xf32> to vector<16x128xf32>
    %6 = tpu.concatenate %1, %3, %5 in 1 : vector<16x128xf32>, vector<16x128xf32>, vector<16x128xf32> -> vector<16x384xf32>
    %c128_i32 = arith.constant 128 : i32
    %7 = arith.muli %arg1, %c128_i32 : i32
    %c128_i32_8 = arith.constant 128 : i32
    %8 = arith.subi %7, %c128_i32_8 : i32
    %9 = tpu.iota {dimensions = array<i32: 1>} : vector<1x384xi32>
    %10 = vector.broadcast %8 : i32 to vector<1x384xi32>
    %11 = arith.addi %9, %10 : vector<1x384xi32>
    %c0_i32 = arith.constant 0 : i32
    %12 = vector.broadcast %c0_i32 : i32 to vector<1x384xi32>
    %13 = arith.cmpi sge, %11, %12 : vector<1x384xi32>
    %c400_i32 = arith.constant 400 : i32
    %14 = vector.broadcast %c400_i32 : i32 to vector<1x384xi32>
    %15 = arith.cmpi slt, %11, %14 : vector<1x384xi32>
    %16 = arith.andi %13, %15 : vector<1x384xi1>
    %17 = arith.extui %16 : vector<1x384xi1> to vector<1x384xi32>
    %18 = arith.sitofp %17 : vector<1x384xi32> to vector<1x384xf32>
    %cst = arith.constant 1.000000e+00 : f32
    %19 = vector.broadcast %cst : f32 to vector<1x384xf32>
    %cst_9 = arith.constant 0.000000e+00 : f32
    %20 = vector.broadcast %cst_9 : f32 to vector<16x1xf32>
    %21 = vector.extract_strided_slice %6 {offsets = [0, 0], sizes = [16, 383], strides = [1, 1]} : vector<16x384xf32> to vector<16x383xf32>
    %22 = tpu.concatenate %20, %21 in 1 : vector<16x1xf32>, vector<16x383xf32> -> vector<16x384xf32>
    %23 = vector.extract_strided_slice %6 {offsets = [0, 1], sizes = [16, 383], strides = [1, 1]} : vector<16x384xf32> to vector<16x383xf32>
    %24 = tpu.concatenate %23, %20 in 1 : vector<16x383xf32>, vector<16x1xf32> -> vector<16x384xf32>
    %25 = tpu.concatenate %22, %6, %24, %19 in 0 : vector<16x384xf32>, vector<16x384xf32>, vector<16x384xf32>, vector<1x384xf32> -> vector<49x384xf32>
    %c0_10 = arith.constant 0 : index
    %c0_11 = arith.constant 0 : index
    %26 = vector.load %arg5[%c0_10, %c0_11] : memref<48x49xf32, #tpu.memory_space<vmem>>, vector<48x49xf32>
    %cst_12 = arith.constant dense<0.000000e+00> : vector<48x384xf32>
    %27 = tpu.matmul %26, %25, %cst_12 {dimension_numbers = #tpu.dot_dimension_numbers<[1], [0], [0], [1], [0, 0, 1, 1], [], []>} : vector<48x49xf32>, vector<49x384xf32>, vector<48x384xf32> -> vector<48x384xf32>
    %cst_13 = arith.constant 4.000000e-01 : f32
    %28 = vector.broadcast %cst_13 : f32 to vector<48x384xf32>
    %29 = arith.mulf %28, %27 : vector<48x384xf32>
    %30 = arith.maximumf %27, %29 : vector<48x384xf32>
    %31 = vector.broadcast %18 : vector<1x384xf32> to vector<48x384xf32>
    %32 = arith.mulf %30, %31 : vector<48x384xf32>
    %cst_14 = arith.constant 0.000000e+00 : f32
    %33 = vector.broadcast %cst_14 : f32 to vector<48x1xf32>
    %34 = vector.extract_strided_slice %32 {offsets = [0, 0], sizes = [48, 383], strides = [1, 1]} : vector<48x384xf32> to vector<48x383xf32>
    %35 = tpu.concatenate %33, %34 in 1 : vector<48x1xf32>, vector<48x383xf32> -> vector<48x384xf32>
    %36 = vector.extract_strided_slice %32 {offsets = [0, 1], sizes = [48, 383], strides = [1, 1]} : vector<48x384xf32> to vector<48x383xf32>
    %37 = tpu.concatenate %36, %33 in 1 : vector<48x383xf32>, vector<48x1xf32> -> vector<48x384xf32>
    %38 = tpu.concatenate %35, %32, %37, %19 in 0 : vector<48x384xf32>, vector<48x384xf32>, vector<48x384xf32>, vector<1x384xf32> -> vector<145x384xf32>
    %c0_15 = arith.constant 0 : index
    %c0_16 = arith.constant 0 : index
    %39 = vector.load %arg6[%c0_15, %c0_16] : memref<80x145xf32, #tpu.memory_space<vmem>>, vector<80x145xf32>
    %cst_17 = arith.constant dense<0.000000e+00> : vector<80x384xf32>
    %40 = tpu.matmul %39, %38, %cst_17 {dimension_numbers = #tpu.dot_dimension_numbers<[1], [0], [0], [1], [0, 0, 1, 1], [], []>} : vector<80x145xf32>, vector<145x384xf32>, vector<80x384xf32> -> vector<80x384xf32>
    %cst_18 = arith.constant 4.000000e-01 : f32
    %41 = vector.broadcast %cst_18 : f32 to vector<80x384xf32>
    %42 = arith.mulf %41, %40 : vector<80x384xf32>
    %43 = arith.maximumf %40, %42 : vector<80x384xf32>
    %44 = vector.broadcast %18 : vector<1x384xf32> to vector<80x384xf32>
    %45 = arith.mulf %43, %44 : vector<80x384xf32>
    %cst_19 = arith.constant 0.000000e+00 : f32
    %46 = vector.broadcast %cst_19 : f32 to vector<80x1xf32>
    %47 = vector.extract_strided_slice %45 {offsets = [0, 0], sizes = [80, 383], strides = [1, 1]} : vector<80x384xf32> to vector<80x383xf32>
    %48 = tpu.concatenate %46, %47 in 1 : vector<80x1xf32>, vector<80x383xf32> -> vector<80x384xf32>
    %49 = vector.extract_strided_slice %45 {offsets = [0, 1], sizes = [80, 383], strides = [1, 1]} : vector<80x384xf32> to vector<80x383xf32>
    %50 = tpu.concatenate %49, %46 in 1 : vector<80x383xf32>, vector<80x1xf32> -> vector<80x384xf32>
    %51 = tpu.concatenate %48, %45, %50, %19 in 0 : vector<80x384xf32>, vector<80x384xf32>, vector<80x384xf32>, vector<1x384xf32> -> vector<241x384xf32>
    %c0_20 = arith.constant 0 : index
    %c0_21 = arith.constant 0 : index
    %52 = vector.load %arg7[%c0_20, %c0_21] : memref<32x241xf32, #tpu.memory_space<vmem>>, vector<32x241xf32>
    %cst_22 = arith.constant dense<0.000000e+00> : vector<32x384xf32>
    %53 = tpu.matmul %52, %51, %cst_22 {dimension_numbers = #tpu.dot_dimension_numbers<[1], [0], [0], [1], [0, 0, 1, 1], [], []>} : vector<32x241xf32>, vector<241x384xf32>, vector<32x384xf32> -> vector<32x384xf32>
    %cst_23 = arith.constant 4.000000e-01 : f32
    %54 = vector.broadcast %cst_23 : f32 to vector<32x384xf32>
    %55 = arith.mulf %54, %53 : vector<32x384xf32>
    %56 = arith.maximumf %53, %55 : vector<32x384xf32>
    %57 = vector.extract_strided_slice %56 {offsets = [0, 128], sizes = [32, 128], strides = [1, 1]} : vector<32x384xf32> to vector<32x128xf32>
    %c0_24 = arith.constant 0 : index
    %c0_25 = arith.constant 0 : index
    %c0_26 = arith.constant 0 : index
    %58 = vector.load %arg8[%c0_24, %c0_25, %c0_26] : memref<1x32x128xf32, #tpu.memory_space<vmem>>, vector<1x32x128xf32>
    %59 = vector.shape_cast %58 : vector<1x32x128xf32> to vector<32x128xf32>
    %60 = vector.shape_cast %57 : vector<32x128xf32> to vector<1x32x128xf32>
    tpu.vector_store %arg8[%c0_24, %c0_25, %c0_26], %60 {strides = array<i32>} : memref<1x32x128xf32, #tpu.memory_space<vmem>>, vector<1x32x128xf32>,
    return
  }
  func.func @transform_0(%arg0: i32, %arg1: i32) -> (i32, i32, i32) {
    %c1_i32 = arith.constant 1 : i32
    %0 = arith.addi %arg1, %c1_i32 : i32
    %c1_i32_0 = arith.constant 1 : i32
    %1 = arith.muli %0, %c1_i32_0 : i32
    %c1_i32_1 = arith.constant 1 : i32
    %2 = arith.subi %1, %c1_i32_1 : i32
    %c0_i32 = arith.constant 0 : i32
    %c0_i32_2 = arith.constant 0 : i32
    return %arg0, %c0_i32, %2 : i32, i32, i32
  }
  func.func @transform_1(%arg0: i32, %arg1: i32) -> (i32, i32, i32) {
    %c1_i32 = arith.constant 1 : i32
    %0 = arith.addi %arg1, %c1_i32 : i32
    %c0_i32 = arith.constant 0 : i32
    %c0_i32_0 = arith.constant 0 : i32
    return %arg0, %c0_i32, %0 : i32, i32, i32
  }
  func.func @transform_2(%arg0: i32, %arg1: i32) -> (i32, i32, i32) {
    %c2_i32 = arith.constant 2 : i32
    %0 = arith.addi %arg1, %c2_i32 : i32
    %c1_i32 = arith.constant 1 : i32
    %1 = arith.muli %0, %c1_i32 : i32
    %c0_i32 = arith.constant 0 : i32
    %c0_i32_0 = arith.constant 0 : i32
    return %arg0, %c0_i32, %1 : i32, i32, i32
  }
  func.func @transform_3(%arg0: i32, %arg1: i32) -> (i32, i32) {
    %c0_i32 = arith.constant 0 : i32
    %c0_i32_0 = arith.constant 0 : i32
    %c0_i32_1 = arith.constant 0 : i32
    return %c0_i32, %c0_i32_0 : i32, i32
  }
  func.func @transform_4(%arg0: i32, %arg1: i32) -> (i32, i32) {
    %c0_i32 = arith.constant 0 : i32
    %c0_i32_0 = arith.constant 0 : i32
    %c0_i32_1 = arith.constant 0 : i32
    return %c0_i32, %c0_i32_0 : i32, i32
  }
  func.func @transform_5(%arg0: i32, %arg1: i32) -> (i32, i32) {
    %c0_i32 = arith.constant 0 : i32
    %c0_i32_0 = arith.constant 0 : i32
    %c0_i32_1 = arith.constant 0 : i32
    return %c0_i32, %c0_i32_0 : i32, i32
  }
  func.func @transform_6(%arg0: i32, %arg1: i32) -> (i32, i32, i32) {
    %c0_i32 = arith.constant 0 : i32
    %c0_i32_0 = arith.constant 0 : i32
    return %arg0, %c0_i32, %arg1 : i32, i32, i32
  }
}

</mosaic_0001>

<llo_original>
// kernel: tpu_custom_call.1
$region0: #{tpu_custom_call.1}
  #allocation0 [shape = 'u32[]', space=smem, size = 0x4, offset = 0x4, fixed_abs, tag = 'smem constant byte address 0x4 - core index']
  #allocation1 [shape = 'u32[72,128]{1,0:T(1,128)}', space=vmem, size = 0x9000, scoped, tag = 'internal scratch']
  %s0 = inlined_call_operand.vmem [shape: f32[2,16,768], index: 0, kind: input, shape index: {}]
  %s1 = inlined_call_operand.hbm [shape: f32[2,16,768], index: 1, kind: input, shape index: {}]
  %s2 = inlined_call_operand.hbm [shape: f32[2,16,768], index: 2, kind: input, shape index: {}]
  %s3 = inlined_call_operand.vmem [shape: f32[48,49], index: 3, kind: input, shape index: {}]
  %s4 = inlined_call_operand.vmem [shape: f32[80,145], index: 4, kind: input, shape index: {}]
  %s5 = inlined_call_operand.vmem [shape: f32[32,241], index: 5, kind: input, shape index: {}]
  %s6 = inlined_call_operand.hbm [shape: f32[2,32,512], index: 6, kind: output, shape index: {}]
  %s7 = sld [smem:[#allocation0]]
  $region103: #{tpu_custom_call.1} parent=0
    _
  %s9 = ssub.s32 1, %s7
  %s10 = scalar_select 0, %s9, %s7
  $region1: #{tpu_custom_call.1} parent=0
    #allocation2 [shape = 'u8[16384]{0}', space=vmem, size = 0x4000, scoped, tag = 'input window, operand 0']
    #allocation3 [shape = 'u8[16384]{0}', space=vmem, size = 0x4000, scoped, tag = 'input window, operand 1']
    #allocation4 [shape = 's32[2]{0}', space=sflag, size = 0x8, scoped, tag = 'scoped memory for tpu_custom_call.1']
    #allocation5 [shape = 's32[2]{0}', space=sflag, size = 0x8, scoped, tag = 'scoped memory for tpu_custom_call.1']
    #allocation6 [shape = 'u8[16384]{0}', space=vmem, size = 0x4000, scoped, tag = 'input window, operand 2']
    #allocation7 [shape = 's32[2]{0}', space=sflag, size = 0x8, scoped, tag = 'scoped memory for tpu_custom_call.1']
    #allocation8 [shape = 'u8[32768]{0}', space=vmem, size = 0x8000, scoped, tag = 'output window, operand 0']
    %11 = vsyncpa [#allocation4], 0
    %s12 = scalar_lea.sflag [#allocation4], 1
    %13 = vsyncpa %s12, 0
    %14 = vsyncpa [#allocation7], 0
    %s15 = scalar_lea.sflag [#allocation7], 1
    %16 = vsyncpa %s15, 0
    %17 = vsyncpa [#allocation5], 0
    %s18 = scalar_lea.sflag [#allocation5], 1
    %19 = vsyncpa %s18, 0
    loop: start=0, step=1, limit=10
    $region2: #{tpu_custom_call.1} parent=1 // loop_pre_header
      _
    $region3: #{tpu_custom_call.1} parent=1 // loop_header
      %s21 = sphi 0, %s25
      %p22 = scmp.ge.s32.totalorder %s21, 10
      %s28 = sphi 0, %s40
      %s29 = sphi 0, %s36
      %s30 = sphi 0, %s28
      %s31 = sphi 0, %s29
      %s32 = sphi 0, %s30
      %s33 = sphi 0, %s31
      %s45 = sphi 0, %s47
      %s48 = sphi 0, %s45
      %s49 = sphi 0, %s48
      %s65 = sphi 0, %s49
      %s75 = sphi 0, %s77
      %s78 = sphi 0, %s75
      %s79 = sphi 0, %s78
      %s95 = sphi 0, %s79
      %s105 = sphi 0, %s107
      %s108 = sphi 0, %s105
      %s109 = sphi 0, %s108
      %s125 = sphi 0, %s109
      %s129 = sphi 0, %s129
      %s131 = sphi 0, %s129
      %s132 = sphi 0, %s131
      %s146 = sphi 0, %s132
      %s150 = sphi 0, %s150
      %s152 = sphi 0, %s150
      %s153 = sphi 0, %s152
      %s167 = sphi 0, %s153
      %s171 = sphi 0, %s171
      %s173 = sphi 0, %s171
      %s174 = sphi 0, %s173
      %s188 = sphi 0, %s174
      %s196 = sphi 0, %s198
      %s199 = sphi 0, %s196
      %s200 = sphi 0, %s199
      %s216 = sphi 0, %s200
    $region4: #{tpu_custom_call.1} parent=1 // loop_header_branch
      %24 = sbr.rel (%p22) target = $region8
    $region5: #{tpu_custom_call.1} parent=1 // loop_body
      %s26 = ssub.s32 %s21, 1
      %s27 = ssub.s32 %s21, 2
      %s34 = sadd.s32 1, %s29
      %p35 = scmp.ge.s32.totalorder %s34, 4
      %s36 = scalar_select %p35, 0, %s34
      %s37 = sadd.s32 1, %s28
      %s38 = scalar_select %p35, %s37, %s28
      %p39 = scmp.ge.s32.totalorder %s38, 2
      %s40 = scalar_select %p39, 0, %s38
      %s41 = ssub.s32 %s28, %s40
      %s42 = ssub.s32 %s29, %s36
      %s43 = sor.u32 %s41, %s42
      %p44 = scmp.eq.s32.totalorder %s43, 0
      %s46 = sadd.s32 %s45, 1
      %s47 = scalar_select %p44, %s45, %s46
      %p50 = pneg %p44
      %p51 = scmp.eq.s32.totalorder %s21, 7
      %p52 = por %p50, %p51
      %p53 = scmp.ne.s32.totalorder %s45, %s48
      %p54 = scmp.eq.s32.totalorder %s21, 0
      %p55 = por %p53, %p54
      %p56 = scmp.ne.s32.totalorder %s45, %s48
      %p57 = scmp.eq.s32.totalorder %s26, 7
      %p58 = por %p56, %p57
      %p59 = scmp.ne.s32.totalorder %s48, %s49
      %p60 = scmp.eq.s32.totalorder %s26, 0
      %p61 = por %p59, %p60
      %p62 = scmp.ne.s32.totalorder %s48, %s49
      %p63 = scmp.eq.s32.totalorder %s27, 7
      %p64 = por %p62, %p63
      %p66 = scmp.ne.s32.totalorder %s49, %s65
      %p67 = scmp.eq.s32.totalorder %s27, 0
      %p68 = por %p66, %p67
      %s69 = sadd.s32 %s29, 1
      %s70 = sadd.s32 %s36, 1
      %s71 = ssub.s32 %s28, %s40
      %s72 = ssub.s32 %s69, %s70
      %s73 = sor.u32 %s71, %s72
      %p74 = scmp.eq.s32.totalorder %s73, 0
      %s76 = sadd.s32 %s75, 1
      %s77 = scalar_select %p74, %s75, %s76
      %p80 = pneg %p74
      %p81 = scmp.eq.s32.totalorder %s21, 7
      %p82 = por %p80, %p81
      %p83 = scmp.ne.s32.totalorder %s75, %s78
      %p84 = scmp.eq.s32.totalorder %s21, 0
      %p85 = por %p83, %p84
      %p86 = scmp.ne.s32.totalorder %s75, %s78
      %p87 = scmp.eq.s32.totalorder %s26, 7
      %p88 = por %p86, %p87
      %p89 = scmp.ne.s32.totalorder %s78, %s79
      %p90 = scmp.eq.s32.totalorder %s26, 0
      %p91 = por %p89, %p90
      %p92 = scmp.ne.s32.totalorder %s78, %s79
      %p93 = scmp.eq.s32.totalorder %s27, 7
      %p94 = por %p92, %p93
      %p96 = scmp.ne.s32.totalorder %s79, %s95
      %p97 = scmp.eq.s32.totalorder %s27, 0
      %p98 = por %p96, %p97
      %s99 = sadd.s32 %s29, 2
      %s100 = sadd.s32 %s36, 2
      %s101 = ssub.s32 %s28, %s40
      %s102 = ssub.s32 %s99, %s100
      %s103 = sor.u32 %s101, %s102
      %p104 = scmp.eq.s32.totalorder %s103, 0
      %s106 = sadd.s32 %s105, 1
      %s107 = scalar_select %p104, %s105, %s106
      %p110 = pneg %p104
      %p111 = scmp.eq.s32.totalorder %s21, 7
      %p112 = por %p110, %p111
      %p113 = scmp.ne.s32.totalorder %s105, %s108
      %p114 = scmp.eq.s32.totalorder %s21, 0
      %p115 = por %p113, %p114
      %p116 = scmp.ne.s32.totalorder %s105, %s108
      %p117 = scmp.eq.s32.totalorder %s26, 7
      %p118 = por %p116, %p117
      %p119 = scmp.ne.s32.totalorder %s108, %s109
      %p120 = scmp.eq.s32.totalorder %s26, 0
      %p121 = por %p119, %p120
      %p122 = scmp.ne.s32.totalorder %s108, %s109
      %p123 = scmp.eq.s32.totalorder %s27, 7
      %p124 = por %p122, %p123
      %p126 = scmp.ne.s32.totalorder %s109, %s125
      %p127 = scmp.eq.s32.totalorder %s27, 0
      %p128 = por %p126, %p127
      %s130 = sadd.s32 %s129, 1
      %p133 = scmp.eq.s32.totalorder %s21, 7
      %p134 = scmp.ne.s32.totalorder %s129, %s131
      %p135 = scmp.eq.s32.totalorder %s21, 0
      %p136 = por %p134, %p135
      %p137 = scmp.ne.s32.totalorder %s129, %s131
      %p138 = scmp.eq.s32.totalorder %s26, 7
      %p139 = por %p137, %p138
      %p140 = scmp.ne.s32.totalorder %s131, %s132
      %p141 = scmp.eq.s32.totalorder %s26, 0
      %p142 = por %p140, %p141
      %p143 = scmp.ne.s32.totalorder %s131, %s132
      %p144 = scmp.eq.s32.totalorder %s27, 7
      %p145 = por %p143, %p144
      %p147 = scmp.ne.s32.totalorder %s132, %s146
      %p148 = scmp.eq.s32.totalorder %s27, 0
      %p149 = por %p147, %p148
      %s151 = sadd.s32 %s150, 1
      %p154 = scmp.eq.s32.totalorder %s21, 7
      %p155 = scmp.ne.s32.totalorder %s150, %s152
      %p156 = scmp.eq.s32.totalorder %s21, 0
      %p157 = por %p155, %p156
      %p158 = scmp.ne.s32.totalorder %s150, %s152
      %p159 = scmp.eq.s32.totalorder %s26, 7
      %p160 = por %p158, %p159
      %p161 = scmp.ne.s32.totalorder %s152, %s153
      %p162 = scmp.eq.s32.totalorder %s26, 0
      %p163 = por %p161, %p162
      %p164 = scmp.ne.s32.totalorder %s152, %s153
      %p165 = scmp.eq.s32.totalorder %s27, 7
      %p166 = por %p164, %p165
      %p168 = scmp.ne.s32.totalorder %s153, %s167
      %p169 = scmp.eq.s32.totalorder %s27, 0
      %p170 = por %p168, %p169
      %s172 = sadd.s32 %s171, 1
      %p175 = scmp.eq.s32.totalorder %s21, 7
      %p176 = scmp.ne.s32.totalorder %s171, %s173
      %p177 = scmp.eq.s32.totalorder %s21, 0
      %p178 = por %p176, %p177
      %p179 = scmp.ne.s32.totalorder %s171, %s173
      %p180 = scmp.eq.s32.totalorder %s26, 7
      %p181 = por %p179, %p180
      %p182 = scmp.ne.s32.totalorder %s173, %s174
      %p183 = scmp.eq.s32.totalorder %s26, 0
      %p184 = por %p182, %p183
      %p185 = scmp.ne.s32.totalorder %s173, %s174
      %p186 = scmp.eq.s32.totalorder %s27, 7
      %p187 = por %p185, %p186
      %p189 = scmp.ne.s32.totalorder %s174, %s188
      %p190 = scmp.eq.s32.totalorder %s27, 0
      %p191 = por %p189, %p190
      %s192 = ssub.s32 %s28, %s40
      %s193 = ssub.s32 %s29, %s36
      %s194 = sor.u32 %s192, %s193
      %p195 = scmp.eq.s32.totalorder %s194, 0
      %s197 = sadd.s32 %s196, 1
      %s198 = scalar_select %p195, %s196, %s197
      %p201 = pneg %p195
      %p202 = scmp.eq.s32.totalorder %s21, 7
      %p203 = por %p201, %p202
      %p204 = scmp.ne.s32.totalorder %s196, %s199
      %p205 = scmp.eq.s32.totalorder %s21, 0
      %p206 = por %p204, %p205
      %p207 = scmp.ne.s32.totalorder %s196, %s199
      %p208 = scmp.eq.s32.totalorder %s26, 7
      %p209 = por %p207, %p208
      %p210 = scmp.ne.s32.totalorder %s199, %s200
      %p211 = scmp.eq.s32.totalorder %s26, 0
      %p212 = por %p210, %p211
      %p213 = scmp.ne.s32.totalorder %s199, %s200
      %p214 = scmp.eq.s32.totalorder %s27, 7
      %p215 = por %p213, %p214
      %p217 = scmp.ne.s32.totalorder %s200, %s216
      %p218 = scmp.eq.s32.totalorder %s27, 0
      %p219 = por %p217, %p218
      %p220 = scmp.le.s32.totalorder 1, %s21
      %p221 = scmp.lt.s32.totalorder %s21, 9
      %p222 = pnand %p220, %p221
      %p223 = pneg %p222
      // Predicated region
      $region9: #{tpu_custom_call.1} parent=5 // pred_check
        _
      $region10: #{tpu_custom_call.1} parent=5 // pred_check_branch
        %225 = sbr.rel (%p222) target = $region12
      $region11: #{tpu_custom_call.1} parent=5 // pred_region
        %s226 = ssub.s32 %s21, 1
        // Predicated region
        $region13: #{tpu_custom_call.1} parent=11 // pred_check
          %p227 = pneg %p142
        $region14: #{tpu_custom_call.1} parent=11 // pred_check_branch
          %229 = sbr.rel (%p227) target = $region16
        $region15: #{tpu_custom_call.1} parent=11 // pred_region
          _
        $region16: #{tpu_custom_call.1} parent=11 // pred_fallthru
          _
        // Predicated region
        $region17: #{tpu_custom_call.1} parent=11 // pred_check
          %p230 = pneg %p163
        $region18: #{tpu_custom_call.1} parent=11 // pred_check_branch
          %232 = sbr.rel (%p230) target = $region20
        $region19: #{tpu_custom_call.1} parent=11 // pred_region
          _
        $region20: #{tpu_custom_call.1} parent=11 // pred_fallthru
          _
        // Predicated region
        $region21: #{tpu_custom_call.1} parent=11 // pred_check
          %p233 = pneg %p184
        $region22: #{tpu_custom_call.1} parent=11 // pred_check_branch
          %235 = sbr.rel (%p233) target = $region24
        $region23: #{tpu_custom_call.1} parent=11 // pred_region
          _
        $region24: #{tpu_custom_call.1} parent=11 // pred_fallthru
          _
      $region12: #{tpu_custom_call.1} parent=5 // pred_fallthru
        _
      %p236 = scmp.lt.s32.totalorder %s21, 8
      // Predicated region
      $region25: #{tpu_custom_call.1} parent=5 // pred_check
        %p237 = pneg %p236
      $region26: #{tpu_custom_call.1} parent=5 // pred_check_branch
        %239 = sbr.rel (%p237) target = $region28
      $region27: #{tpu_custom_call.1} parent=5 // pred_region
        // Predicated region
        $region29: #{tpu_custom_call.1} parent=27 // pred_check
          %p240 = pneg %p55
        $region30: #{tpu_custom_call.1} parent=27 // pred_check_branch
          %242 = sbr.rel (%p240) target = $region32
        $region31: #{tpu_custom_call.1} parent=27 // pred_region
          %s243 = sand.u32 %s45, 1
          %s244 = sand.u32 %s45, 1
          %s245 = smul.addr %s244, 16
          %s246 = scalar_lea.vmem [#allocation2], %s245
          %s247 = smul.addr %s28, 12
          %s248 = sadd.s32 %s29, %s247
          %s249 = smul.addr %s248, 8
          %s250 = scalar_lea.vmem %s0, %s249
          // Predicated region
          $region33: #{tpu_custom_call.1} parent=31 // pred_check
            _
          $region34: #{tpu_custom_call.1} parent=31 // pred_check_branch
            %252 = sbr.rel (0) target = $region36
          $region35: #{tpu_custom_call.1} parent=31 // pred_region
            // Predicated region
            $region37: #{tpu_custom_call.1} parent=35 // pred_check
              _
            $region38: #{tpu_custom_call.1} parent=35 // pred_check_branch
              %254 = sbr.rel (0) target = $region40
            $region39: #{tpu_custom_call.1} parent=35 // pred_region
              // Predicated region
              $region52: #{tpu_custom_call.1} parent=39 // pred_check
                _
              $region53: #{tpu_custom_call.1} parent=39 // pred_check_branch
                %272 = sbr.rel (0) target = $region55
              $region54: #{tpu_custom_call.1} parent=39 // pred_region
                loop: start=0, step=1, limit=1
                $region56: #{tpu_custom_call.1} parent=54 // loop_pre_header
                  _
                $region57: #{tpu_custom_call.1} parent=54 // loop_header
                  %s274 = sphi 0, %s278
                  %p275 = scmp.ge.s32.totalorder %s274, 1
                  %s279 = sphi %s250, %s250
                  %s280 = sphi %s246, %s246
                $region58: #{tpu_custom_call.1} parent=54 // loop_header_branch
                  %277 = sbr.rel (%p275) target = $region62
                $region59: #{tpu_custom_call.1} parent=54 // loop_body
                  %v281 = vld [vmem:[%s279] sm:$0xff]
                  %282 = vst [vmem:[%s280] sm:$0xff] %v281
                  %v283 = vld [vmem:[%s279 + $0x30] sm:$0xff]
                  %284 = vst [vmem:[%s280 + $0x8] sm:$0xff] %v283
                $region60: #{tpu_custom_call.1} parent=54 // loop_footer
                  %s278 = sadd.s32 1, %s274
                $region61: #{tpu_custom_call.1} parent=54 // loop_footer_branch
                  %273 = sbr.rel target = $region57
                $region62: #{tpu_custom_call.1} parent=54 // loop_exit
                  _
              $region55: #{tpu_custom_call.1} parent=39 // pred_fallthru
                _
              // Predicated region
              $region63: #{tpu_custom_call.1} parent=39 // pred_check
                _
              $region64: #{tpu_custom_call.1} parent=39 // pred_check_branch
                %286 = sbr.rel target = $region66
              $region65: #{tpu_custom_call.1} parent=39 // pred_region
                _
              $region66: #{tpu_custom_call.1} parent=39 // pred_fallthru
                _
            $region40: #{tpu_custom_call.1} parent=35 // pred_fallthru
              _
            // Predicated region
            $region41: #{tpu_custom_call.1} parent=35 // pred_check
              _
            $region42: #{tpu_custom_call.1} parent=35 // pred_check_branch
              %256 = sbr.rel target = $region44
            $region43: #{tpu_custom_call.1} parent=35 // pred_region
              %s258 = ssub.s32 256, 1
              loop: start=0, step=1, limit=1
              $region45: #{tpu_custom_call.1} parent=43 // loop_pre_header
                _
              $region46: #{tpu_custom_call.1} parent=43 // loop_header
                %s260 = sphi 0, %s264
                %p261 = scmp.ge.s32.totalorder %s260, 1
                %s265 = sphi %s250, %s250
                %s266 = sphi %s246, %s246
              $region47: #{tpu_custom_call.1} parent=43 // loop_header_branch
                %263 = sbr.rel (%p261) target = $region51
              $region48: #{tpu_custom_call.1} parent=43 // loop_body
                %v267 = vld [vmem:[%s265] sm:%s258]
                %268 = vst [vmem:[%s266] sm:%s258] %v267
                %v269 = vld [vmem:[%s265 + $0x30] sm:%s258]
                %270 = vst [vmem:[%s266 + $0x8] sm:%s258] %v269
              $region49: #{tpu_custom_call.1} parent=43 // loop_footer
                %s264 = sadd.s32 1, %s260
              $region50: #{tpu_custom_call.1} parent=43 // loop_footer_branch
                %259 = sbr.rel target = $region46
              $region51: #{tpu_custom_call.1} parent=43 // loop_exit
                _
            $region44: #{tpu_custom_call.1} parent=35 // pred_fallthru
              _
          $region36: #{tpu_custom_call.1} parent=31 // pred_fallthru
            _
          %287 = vnop
        $region32: #{tpu_custom_call.1} parent=27 // pred_fallthru
          _
        // Predicated region
        $region67: #{tpu_custom_call.1} parent=27 // pred_check
          %p288 = pneg %p85
        $region68: #{tpu_custom_call.1} parent=27 // pred_check_branch
          %290 = sbr.rel (%p288) target = $region70
        $region69: #{tpu_custom_call.1} parent=27 // pred_region
          %s291 = sand.u32 %s75, 1
          %s292 = scalar_lea.sflag [#allocation4], %s291
          %s293 = sand.u32 %s75, 1
          %s294 = smul.addr %s293, 16
          %s295 = scalar_lea.vmem [#allocation3], %s294
          %s296 = sadd.s32 %s29, 1
          %298 = vsyncadd %s292, 0
          %s299 = smul.addr %s28, 12
          %s300 = sadd.s32 %s296, %s299
          %s301 = smul.addr %s300, 8
          %s302 = scalar_lea.hbm %s1, %s301
          %s303 = sshll.u32 %s302, 4
          %s304 = int_to_ptr.hbm [resolvable:$true] %s303
          %s305 = sshll.u32 %s295, 4
          %s306 = int_to_ptr.vmem [resolvable:$true] %s305
          %311 = dma.hbm_to_vmem [thread:$0]  %s304, 256, %s306, %s292, 768, 128, 8
        $region70: #{tpu_custom_call.1} parent=27 // pred_fallthru
          _
        // Predicated region
        $region71: #{tpu_custom_call.1} parent=27 // pred_check
          %p312 = pneg %p115
        $region72: #{tpu_custom_call.1} parent=27 // pred_check_branch
          %314 = sbr.rel (%p312) target = $region74
        $region73: #{tpu_custom_call.1} parent=27 // pred_region
          %s315 = sand.u32 %s105, 1
          %s316 = scalar_lea.sflag [#allocation7], %s315
          %s317 = sand.u32 %s105, 1
          %s318 = smul.addr %s317, 16
          %s319 = scalar_lea.vmem [#allocation6], %s318
          %s320 = sadd.s32 %s29, 2
          %322 = vsyncadd %s316, 0
          %s323 = smul.addr %s28, 12
          %s324 = sadd.s32 %s320, %s323
          %s325 = smul.addr %s324, 8
          %s326 = scalar_lea.hbm %s2, %s325
          %s327 = sshll.u32 %s326, 4
          %s328 = int_to_ptr.hbm [resolvable:$true] %s327
          %s329 = sshll.u32 %s319, 4
          %s330 = int_to_ptr.vmem [resolvable:$true] %s329
          %335 = dma.hbm_to_vmem [thread:$0]  %s328, 256, %s330, %s316, 768, 128, 8
        $region74: #{tpu_custom_call.1} parent=27 // pred_fallthru
          _
      $region28: #{tpu_custom_call.1} parent=5 // pred_fallthru
        _
      %p336 = scmp.le.s32.totalorder 1, %s21
      %p337 = scmp.lt.s32.totalorder %s21, 9
      %p338 = pnand %p336, %p337
      %p339 = pneg %p338
      // Predicated region
      $region75: #{tpu_custom_call.1} parent=5 // pred_check
        _
      $region76: #{tpu_custom_call.1} parent=5 // pred_check_branch
        %341 = sbr.rel (%p338) target = $region78
      $region77: #{tpu_custom_call.1} parent=5 // pred_region
        %s342 = ssub.s32 %s21, 1
        %s343 = sand.u32 %s48, 1
        %s344 = sand.u32 %s48, 1
        %s345 = smul.addr %s344, 16
        %s346 = scalar_lea.vmem [#allocation2], %s345
        // Predicated region
        $region79: #{tpu_custom_call.1} parent=77 // pred_check
          %p347 = pneg %p61
        $region80: #{tpu_custom_call.1} parent=77 // pred_check_branch
          %349 = sbr.rel (%p347) target = $region82
        $region81: #{tpu_custom_call.1} parent=77 // pred_region
          _
        $region82: #{tpu_custom_call.1} parent=77 // pred_fallthru
          _
        %s350 = sand.u32 %s78, 1
        %s351 = scalar_lea.sflag [#allocation4], %s350
        %s352 = sand.u32 %s78, 1
        %s353 = smul.addr %s352, 16
        %s354 = scalar_lea.vmem [#allocation3], %s353
        // Predicated region
        $region83: #{tpu_custom_call.1} parent=77 // pred_check
          %p355 = pneg %p91
        $region84: #{tpu_custom_call.1} parent=77 // pred_check_branch
          %357 = sbr.rel (%p355) target = $region86
        $region85: #{tpu_custom_call.1} parent=77 // pred_region
          %359 = dma.done %s351, 256
        $region86: #{tpu_custom_call.1} parent=77 // pred_fallthru
          _
        %s360 = sand.u32 %s108, 1
        %s361 = scalar_lea.sflag [#allocation7], %s360
        %s362 = sand.u32 %s108, 1
        %s363 = smul.addr %s362, 16
        %s364 = scalar_lea.vmem [#allocation6], %s363
        // Predicated region
        $region87: #{tpu_custom_call.1} parent=77 // pred_check
          %p365 = pneg %p121
        $region88: #{tpu_custom_call.1} parent=77 // pred_check_branch
          %367 = sbr.rel (%p365) target = $region90
        $region89: #{tpu_custom_call.1} parent=77 // pred_region
          %369 = dma.done %s361, 256
        $region90: #{tpu_custom_call.1} parent=77 // pred_fallthru
          _
        %s370 = sand.u32 %s48, 1
        %s371 = sand.u32 %s48, 1
        %s372 = smul.addr %s371, 16
        %s373 = scalar_lea.vmem [#allocation2], %s372
        %p374 = pneg %p61
        %p375 = pneg %p58
        %s376 = sand.u32 %s78, 1
        %s377 = scalar_lea.sflag [#allocation4], %s376
        %s378 = sand.u32 %s78, 1
        %s379 = smul.addr %s378, 16
        %s380 = scalar_lea.vmem [#allocation3], %s379
        %p381 = pneg %p91
        %p382 = pneg %p88
        %s383 = sand.u32 %s108, 1
        %s384 = scalar_lea.sflag [#allocation7], %s383
        %s385 = sand.u32 %s108, 1
        %s386 = smul.addr %s385, 16
        %s387 = scalar_lea.vmem [#allocation6], %s386
        %p388 = pneg %p121
        %p389 = pneg %p118
        %p390 = pneg %p142
        %p391 = pneg %p139
        %p392 = pneg %p163
        %p393 = pneg %p160
        %p394 = pneg %p184
        %p395 = pneg %p181
        %p396 = pneg %p212
        %p397 = pneg %p209
        %s398 = sand.u32 %s199, 1
        %s399 = scalar_lea.sflag [#allocation5], %s398
        %s400 = sand.u32 %s199, 1
        %s401 = smul.addr %s400, 32
        %s402 = scalar_lea.vmem [#allocation8], %s401
        %s403 = sadd.s32 %s31, 1
        %s404 = sadd.s32 %s31, 2
        %v405 = vld [vmem:[%s346] sm:$0xff]
        %v406 = vld [vmem:[%s346 + $0x8] sm:$0xff]
        %v407 = vld [vmem:[%s354] sm:$0xff]
        %v408 = vld [vmem:[%s354 + $0x8] sm:$0xff]
        %v409 = vld [vmem:[%s364] sm:$0xff]
        %v410 = vld [vmem:[%s364 + $0x8] sm:$0xff]
        %s411 = smul.u32 %s31, 128
        %s412 = ssub.s32 %s411, 128
        %v413 = vlaneseq
        %v414 = vand.u32 %v413, 127
        %v415 = vadd.s32 %v414, 128
        %v416 = vadd.s32 %v414, 256
        %v417 = vstv %s412
        %v418 = vadd.s32 %v414, %v417
        %v419 = vadd.s32 %v415, %v417
        %v420 = vadd.s32 %v416, %v417
        %vm421 = vcmp.ge.s32.totalorder %v418, 0
        %vm422 = vcmp.ge.s32.totalorder %v419, 0
        %vm423 = vcmp.ge.s32.totalorder %v420, 0
        %vm424 = vcmp.lt.s32.totalorder %v418, 400
        %vm425 = vcmp.lt.s32.totalorder %v419, 400
        %vm426 = vcmp.lt.s32.totalorder %v420, 400
        %vm427 = vmand %vm421, %vm424
        %vm428 = vmand %vm422, %vm425
        %vm429 = vmand %vm423, %vm426
        %v430 = vsel %vm427, 1, 0
        %v431 = vsel %vm428, 1, 0
        %v432 = vsel %vm429, 1, 0
        %v433 = vcvt.s32.f32 %v430
        %v434 = vcvt.s32.f32 %v431
        %v435 = vcvt.s32.f32 %v432
        %442 = vrot.lane.b32.xlu0 %v405, 1
        %v443 = vpop.permute.xlu0 %442
        %444 = vrot.lane.b32.xlu0 %v407, 1
        %v445 = vpop.permute.xlu0 %444
        %446 = vrot.lane.b32.xlu0 %v409, 1
        %v447 = vpop.permute.xlu0 %446
        %448 = vrot.lane.b32.xlu0 %v406, 1
        %v449 = vpop.permute.xlu0 %448
        %450 = vrot.lane.b32.xlu0 %v408, 1
        %v451 = vpop.permute.xlu0 %450
        %452 = vrot.lane.b32.xlu0 %v410, 1
        %v453 = vpop.permute.xlu0 %452
        %vm454 = vcmask 7168
        %v455 = vsel %vm454, %v443, %v445
        %v456 = vsel %vm454, %v445, %v447
        %v457 = vsel %vm454, %v449, %v451
        %v458 = vsel %vm454, %v451, %v453
        %v465 = vsel %vm454, 0.0, %v443
        %v466 = vsel %vm454, 0.0, %v449
        %467 = vrot.lane.b32.xlu0 %v405, 127
        %v468 = vpop.permute.xlu0 %467
        %469 = vrot.lane.b32.xlu0 %v407, 127
        %v470 = vpop.permute.xlu0 %469
        %471 = vrot.lane.b32.xlu0 %v409, 127
        %v472 = vpop.permute.xlu0 %471
        %473 = vrot.lane.b32.xlu0 %v406, 127
        %v474 = vpop.permute.xlu0 %473
        %475 = vrot.lane.b32.xlu0 %v408, 127
        %v476 = vpop.permute.xlu0 %475
        %477 = vrot.lane.b32.xlu0 %v410, 127
        %v478 = vpop.permute.xlu0 %477
        %vm479 = vcmask 1039360
        %v480 = vsel %vm479, %v468, %v470
        %v481 = vsel %vm479, %v470, %v472
        %v482 = vsel %vm479, %v474, %v476
        %v483 = vsel %vm479, %v476, %v478
        %v490 = vsel %vm479, %v472, 0.0
        %v491 = vsel %vm479, %v478, 0.0
        %v492 = vld [vmem:[%s3] sm:$0xff]
        %v493 = vld [vmem:[%s3 + $0x8] sm:$0xff]
        %v494 = vld [vmem:[%s3 + $0x10] sm:$0xff]
        %v495 = vld [vmem:[%s3 + $0x18] sm:$0xff]
        %v496 = vld [vmem:[%s3 + $0x20] sm:$0xff]
        %v497 = vld [vmem:[%s3 + $0x28] sm:$0xff]
        %vm498 = vcmask 400384
        %v500 = vsel %vm498, %v492, 0
        %v503 = vsel %vm498, %v493, 0
        %v506 = vsel %vm498, %v494, 0
        %v509 = vsel %vm498, %v495, 0
        %v512 = vsel %vm498, %v496, 0
        %v515 = vsel %vm498, %v497, 0
        %vm517 = vcmask 1040384
        %v519 = vsel %vm517, 1.0, 0
        %521 = vmatpush.msra.mxu0 0.0
        %522 = vmatpush.msra.mxu0 0.0
        %523 = vmatpush.msra.mxu0 0.0
        %524 = vmatpush.msra.mxu0 0.0
        %525 = vmatpush.msra.mxu0 0.0
        %526 = vmatpush.msra.mxu0 0.0
        %527 = vmatpush.msra.mxu0 0.0
        %528 = vmatpush.msra.mxu0 0.0
        %529 = vmatpush.msra.mxu0 0.0
        %530 = vmatpush.msra.mxu0 %v519
        %531 = vmatpush.msra.mxu0 %v482
        %532 = vmatpush.msra.mxu0 %v480
        %533 = vmatpush.msra.mxu0 %v406
        %534 = vmatpush.msra.mxu0 %v405
        %535 = vmatpush.msra.mxu0 %v466
        %536 = vmatpush.msra.mxu0 %v465
        %537 = vmatmul.f32.gmra.mxu0 %v500
        %v538 = vpop.f32.mrf.mxu0
        %v539 = vadd.f32 0.0, %v538
        %540 = vmatmul.f32.gmra.mxu0 %v503
        %v541 = vpop.f32.mrf.mxu0
        %v542 = vadd.f32 0.0, %v541
        %543 = vmatmul.f32.gmra.mxu0 %v506
        %v544 = vpop.f32.mrf.mxu0
        %v545 = vadd.f32 0.0, %v544
        %546 = vmatmul.f32.gmra.mxu0 %v509
        %v547 = vpop.f32.mrf.mxu0
        %v548 = vadd.f32 0.0, %v547
        %549 = vmatmul.f32.gmra.mxu0 %v512
        %v550 = vpop.f32.mrf.mxu0
        %v551 = vadd.f32 0.0, %v550
        %552 = vmatmul.f32.gmra.mxu0 %v515
        %v553 = vpop.f32.mrf.mxu0
        %v554 = vadd.f32 0.0, %v553
        %555 = vdwg.mxu0
        %556 = vmatpush.msra.mxu0 0.0
        %557 = vmatpush.msra.mxu0 0.0
        %558 = vmatpush.msra.mxu0 0.0
        %559 = vmatpush.msra.mxu0 0.0
        %560 = vmatpush.msra.mxu0 0.0
        %561 = vmatpush.msra.mxu0 0.0
        %562 = vmatpush.msra.mxu0 0.0
        %563 = vmatpush.msra.mxu0 0.0
        %564 = vmatpush.msra.mxu0 0.0
        %565 = vmatpush.msra.mxu0 %v519
        %566 = vmatpush.msra.mxu0 %v483
        %567 = vmatpush.msra.mxu0 %v481
        %568 = vmatpush.msra.mxu0 %v408
        %569 = vmatpush.msra.mxu0 %v407
        %570 = vmatpush.msra.mxu0 %v457
        %571 = vmatpush.msra.mxu0 %v455
        %572 = vmatmul.f32.gmra.mxu0 %v500
        %v573 = vpop.f32.mrf.mxu0
        %v574 = vadd.f32 0.0, %v573
        %575 = vmatmul.f32.gmra.mxu0 %v503
        %v576 = vpop.f32.mrf.mxu0
        %v577 = vadd.f32 0.0, %v576
        %578 = vmatmul.f32.gmra.mxu0 %v506
        %v579 = vpop.f32.mrf.mxu0
        %v580 = vadd.f32 0.0, %v579
        %581 = vmatmul.f32.gmra.mxu0 %v509
        %v582 = vpop.f32.mrf.mxu0
        %v583 = vadd.f32 0.0, %v582
        %584 = vmatmul.f32.gmra.mxu0 %v512
        %v585 = vpop.f32.mrf.mxu0
        %v586 = vadd.f32 0.0, %v585
        %587 = vmatmul.f32.gmra.mxu0 %v515
        %v588 = vpop.f32.mrf.mxu0
        %v589 = vadd.f32 0.0, %v588
        %590 = vdwg.mxu0
        %591 = vmatpush.msra.mxu0 0.0
        %592 = vmatpush.msra.mxu0 0.0
        %593 = vmatpush.msra.mxu0 0.0
        %594 = vmatpush.msra.mxu0 0.0
        %595 = vmatpush.msra.mxu0 0.0
        %596 = vmatpush.msra.mxu0 0.0
        %597 = vmatpush.msra.mxu0 0.0
        %598 = vmatpush.msra.mxu0 0.0
        %599 = vmatpush.msra.mxu0 0.0
        %600 = vmatpush.msra.mxu0 %v519
        %601 = vmatpush.msra.mxu0 %v491
        %602 = vmatpush.msra.mxu0 %v490
        %603 = vmatpush.msra.mxu0 %v410
        %604 = vmatpush.msra.mxu0 %v409
        %605 = vmatpush.msra.mxu0 %v458
        %606 = vmatpush.msra.mxu0 %v456
        %607 = vmatmul.f32.gmra.mxu0 %v500
        %v608 = vpop.f32.mrf.mxu0
        %v609 = vadd.f32 0.0, %v608
        %610 = vmatmul.f32.gmra.mxu0 %v503
        %v611 = vpop.f32.mrf.mxu0
        %v612 = vadd.f32 0.0, %v611
        %613 = vmatmul.f32.gmra.mxu0 %v506
        %v614 = vpop.f32.mrf.mxu0
        %v615 = vadd.f32 0.0, %v614
        %616 = vmatmul.f32.gmra.mxu0 %v509
        %v617 = vpop.f32.mrf.mxu0
        %v618 = vadd.f32 0.0, %v617
        %619 = vmatmul.f32.gmra.mxu0 %v512
        %v620 = vpop.f32.mrf.mxu0
        %v621 = vadd.f32 0.0, %v620
        %622 = vmatmul.f32.gmra.mxu0 %v515
        %v623 = vpop.f32.mrf.mxu0
        %v624 = vadd.f32 0.0, %v623
        %625 = vdwg.mxu0
        %v626 = vmul.f32 %v539, 0.4
        %v627 = vmul.f32 %v574, 0.4
        %v628 = vmul.f32 %v609, 0.4
        %v629 = vmul.f32 %v542, 0.4
        %v630 = vmul.f32 %v577, 0.4
        %v631 = vmul.f32 %v612, 0.4
        %v632 = vmul.f32 %v545, 0.4
        %v633 = vmul.f32 %v580, 0.4
        %v634 = vmul.f32 %v615, 0.4
        %v635 = vmul.f32 %v548, 0.4
        %v636 = vmul.f32 %v583, 0.4
        %v637 = vmul.f32 %v618, 0.4
        %v638 = vmul.f32 %v551, 0.4
        %v639 = vmul.f32 %v586, 0.4
        %v640 = vmul.f32 %v621, 0.4
        %v641 = vmul.f32 %v554, 0.4
        %v642 = vmul.f32 %v589, 0.4
        %v643 = vmul.f32 %v624, 0.4
        %v644 = vmax.f32 %v539, %v626
        %v645 = vmax.f32 %v574, %v627
        %v646 = vmax.f32 %v609, %v628
        %v647 = vmax.f32 %v542, %v629
        %v648 = vmax.f32 %v577, %v630
        %v649 = vmax.f32 %v612, %v631
        %v650 = vmax.f32 %v545, %v632
        %v651 = vmax.f32 %v580, %v633
        %v652 = vmax.f32 %v615, %v634
        %v653 = vmax.f32 %v548, %v635
        %v654 = vmax.f32 %v583, %v636
        %v655 = vmax.f32 %v618, %v637
        %v656 = vmax.f32 %v551, %v638
        %v657 = vmax.f32 %v586, %v639
        %v658 = vmax.f32 %v621, %v640
        %v659 = vmax.f32 %v554, %v641
        %v660 = vmax.f32 %v589, %v642
        %v661 = vmax.f32 %v624, %v643
        %v662 = vmul.f32 %v644, %v433
        %v663 = vmul.f32 %v645, %v434
        %v664 = vmul.f32 %v646, %v435
        %v665 = vmul.f32 %v647, %v433
        %v666 = vmul.f32 %v648, %v434
        %v667 = vmul.f32 %v649, %v435
        %v668 = vmul.f32 %v650, %v433
        %v669 = vmul.f32 %v651, %v434
        %v670 = vmul.f32 %v652, %v435
        %v671 = vmul.f32 %v653, %v433
        %v672 = vmul.f32 %v654, %v434
        %v673 = vmul.f32 %v655, %v435
        %v674 = vmul.f32 %v656, %v433
        %v675 = vmul.f32 %v657, %v434
        %v676 = vmul.f32 %v658, %v435
        %v677 = vmul.f32 %v659, %v433
        %v678 = vmul.f32 %v660, %v434
        %v679 = vmul.f32 %v661, %v435
        %698 = vrot.lane.b32.xlu0 %v662, 1
        %v699 = vpop.permute.xlu0 %698
        %700 = vrot.lane.b32.xlu0 %v663, 1
        %v701 = vpop.permute.xlu0 %700
        %702 = vrot.lane.b32.xlu0 %v664, 1
        %v703 = vpop.permute.xlu0 %702
        %704 = vrot.lane.b32.xlu0 %v665, 1
        %v705 = vpop.permute.xlu0 %704
        %706 = vrot.lane.b32.xlu0 %v666, 1
        %v707 = vpop.permute.xlu0 %706
        %708 = vrot.lane.b32.xlu0 %v667, 1
        %v709 = vpop.permute.xlu0 %708
        %710 = vrot.lane.b32.xlu0 %v668, 1
        %v711 = vpop.permute.xlu0 %710
        %712 = vrot.lane.b32.xlu0 %v669, 1
        %v713 = vpop.permute.xlu0 %712
        %714 = vrot.lane.b32.xlu0 %v670, 1
        %v715 = vpop.permute.xlu0 %714
        %716 = vrot.lane.b32.xlu0 %v671, 1
        %v717 = vpop.permute.xlu0 %716
        %718 = vrot.lane.b32.xlu0 %v672, 1
        %v719 = vpop.permute.xlu0 %718
        %720 = vrot.lane.b32.xlu0 %v673, 1
        %v721 = vpop.permute.xlu0 %720
        %722 = vrot.lane.b32.xlu0 %v674, 1
        %v723 = vpop.permute.xlu0 %722
        %724 = vrot.lane.b32.xlu0 %v675, 1
        %v725 = vpop.permute.xlu0 %724
        %726 = vrot.lane.b32.xlu0 %v676, 1
        %v727 = vpop.permute.xlu0 %726
        %728 = vrot.lane.b32.xlu0 %v677, 1
        %v729 = vpop.permute.xlu0 %728
        %730 = vrot.lane.b32.xlu0 %v678, 1
        %v731 = vpop.permute.xlu0 %730
        %732 = vrot.lane.b32.xlu0 %v679, 1
        %v733 = vpop.permute.xlu0 %732
        %v734 = vsel %vm454, %v699, %v701
        %v735 = vsel %vm454, %v701, %v703
        %v736 = vsel %vm454, %v705, %v707
        %v737 = vsel %vm454, %v707, %v709
        %v738 = vsel %vm454, %v711, %v713
        %v739 = vsel %vm454, %v713, %v715
        %v740 = vsel %vm454, %v717, %v719
        %v741 = vsel %vm454, %v719, %v721
        %v742 = vsel %vm454, %v723, %v725
        %v743 = vsel %vm454, %v725, %v727
        %v744 = vsel %vm454, %v729, %v731
        %v745 = vsel %vm454, %v731, %v733
        %v764 = vsel %vm454, 0.0, %v699
        %v765 = vsel %vm454, 0.0, %v705
        %v766 = vsel %vm454, 0.0, %v711
        %v767 = vsel %vm454, 0.0, %v717
        %v768 = vsel %vm454, 0.0, %v723
        %v769 = vsel %vm454, 0.0, %v729
        %770 = vrot.lane.b32.xlu0 %v662, 127
        %v771 = vpop.permute.xlu0 %770
        %772 = vrot.lane.b32.xlu0 %v663, 127
        %v773 = vpop.permute.xlu0 %772
        %774 = vrot.lane.b32.xlu0 %v664, 127
        %v775 = vpop.permute.xlu0 %774
        %776 = vrot.lane.b32.xlu0 %v665, 127
        %v777 = vpop.permute.xlu0 %776
        %778 = vrot.lane.b32.xlu0 %v666, 127
        %v779 = vpop.permute.xlu0 %778
        %780 = vrot.lane.b32.xlu0 %v667, 127
        %v781 = vpop.permute.xlu0 %780
        %782 = vrot.lane.b32.xlu0 %v668, 127
        %v783 = vpop.permute.xlu0 %782
        %784 = vrot.lane.b32.xlu0 %v669, 127
        %v785 = vpop.permute.xlu0 %784
        %786 = vrot.lane.b32.xlu0 %v670, 127
        %v787 = vpop.permute.xlu0 %786
        %788 = vrot.lane.b32.xlu0 %v671, 127
        %v789 = vpop.permute.xlu0 %788
        %790 = vrot.lane.b32.xlu0 %v672, 127
        %v791 = vpop.permute.xlu0 %790
        %792 = vrot.lane.b32.xlu0 %v673, 127
        %v793 = vpop.permute.xlu0 %792
        %794 = vrot.lane.b32.xlu0 %v674, 127
        %v795 = vpop.permute.xlu0 %794
        %796 = vrot.lane.b32.xlu0 %v675, 127
        %v797 = vpop.permute.xlu0 %796
        %798 = vrot.lane.b32.xlu0 %v676, 127
        %v799 = vpop.permute.xlu0 %798
        %800 = vrot.lane.b32.xlu0 %v677, 127
        %v801 = vpop.permute.xlu0 %800
        %802 = vrot.lane.b32.xlu0 %v678, 127
        %v803 = vpop.permute.xlu0 %802
        %804 = vrot.lane.b32.xlu0 %v679, 127
        %v805 = vpop.permute.xlu0 %804
        %v806 = vsel %vm479, %v771, %v773
        %v807 = vsel %vm479, %v773, %v775
        %v808 = vsel %vm479, %v777, %v779
        %v809 = vsel %vm479, %v779, %v781
        %v810 = vsel %vm479, %v783, %v785
        %v811 = vsel %vm479, %v785, %v787
        %v812 = vsel %vm479, %v789, %v791
        %v813 = vsel %vm479, %v791, %v793
        %v814 = vsel %vm479, %v795, %v797
        %v815 = vsel %vm479, %v797, %v799
        %v816 = vsel %vm479, %v801, %v803
        %v817 = vsel %vm479, %v803, %v805
        %v836 = vsel %vm479, %v775, 0.0
        %v837 = vsel %vm479, %v781, 0.0
        %v838 = vsel %vm479, %v787, 0.0
        %v839 = vsel %vm479, %v793, 0.0
        %v840 = vsel %vm479, %v799, 0.0
        %v841 = vsel %vm479, %v805, 0.0
        %v842 = vld [vmem:[%s4] sm:$0xff]
        %v843 = vld [vmem:[%s4 + $0x8] sm:$0xff]
        %v844 = vld [vmem:[%s4 + $0x10] sm:$0xff]
        %v845 = vld [vmem:[%s4 + $0x18] sm:$0xff]
        %v846 = vld [vmem:[%s4 + $0x20] sm:$0xff]
        %v847 = vld [vmem:[%s4 + $0x28] sm:$0xff]
        %v848 = vld [vmem:[%s4 + $0x30] sm:$0xff]
        %v849 = vld [vmem:[%s4 + $0x38] sm:$0xff]
        %v850 = vld [vmem:[%s4 + $0x40] sm:$0xff]
        %v851 = vld [vmem:[%s4 + $0x48] sm:$0xff]
        %v852 = vld [vmem:[%s4 + $0x50] sm:$0xff]
        %v853 = vld [vmem:[%s4 + $0x58] sm:$0xff]
        %v854 = vld [vmem:[%s4 + $0x60] sm:$0xff]
        %v855 = vld [vmem:[%s4 + $0x68] sm:$0xff]
        %v856 = vld [vmem:[%s4 + $0x70] sm:$0xff]
        %v857 = vld [vmem:[%s4 + $0x78] sm:$0xff]
        %v858 = vld [vmem:[%s4 + $0x80] sm:$0xff]
        %v859 = vld [vmem:[%s4 + $0x88] sm:$0xff]
        %v860 = vld [vmem:[%s4 + $0x90] sm:$0xff]
        %v861 = vld [vmem:[%s4 + $0x98] sm:$0xff]
        %vm862 = vcmask 138240
        %v864 = vsel %vm862, %v843, 0
        %v867 = vsel %vm862, %v845, 0
        %v870 = vsel %vm862, %v847, 0
        %v873 = vsel %vm862, %v849, 0
        %v876 = vsel %vm862, %v851, 0
        %v879 = vsel %vm862, %v853, 0
        %v882 = vsel %vm862, %v855, 0
        %v885 = vsel %vm862, %v857, 0
        %v888 = vsel %vm862, %v859, 0
        %v891 = vsel %vm862, %v861, 0
        %893 = vmatpush.msra.mxu0 %v812
        %894 = vmatpush.msra.mxu0 %v810
        %895 = vmatpush.msra.mxu0 %v808
        %896 = vmatpush.msra.mxu0 %v806
        %897 = vmatpush.msra.mxu0 %v677
        %898 = vmatpush.msra.mxu0 %v674
        %899 = vmatpush.msra.mxu0 %v671
        %900 = vmatpush.msra.mxu0 %v668
        %901 = vmatpush.msra.mxu0 %v665
        %902 = vmatpush.msra.mxu0 %v662
        %903 = vmatpush.msra.mxu0 %v769
        %904 = vmatpush.msra.mxu0 %v768
        %905 = vmatpush.msra.mxu0 %v767
        %906 = vmatpush.msra.mxu0 %v766
        %907 = vmatpush.msra.mxu0 %v765
        %908 = vmatpush.msra.mxu0 %v764
        %909 = vmatmul.f32.gmra.mxu0 %v842
        %v910 = vpop.f32.mrf.mxu0
        %v911 = vadd.f32 0.0, %v910
        %912 = vmatmul.f32.gmra.mxu0 %v844
        %v913 = vpop.f32.mrf.mxu0
        %v914 = vadd.f32 0.0, %v913
        %915 = vmatmul.f32.gmra.mxu0 %v846
        %v916 = vpop.f32.mrf.mxu0
        %v917 = vadd.f32 0.0, %v916
        %918 = vmatmul.f32.gmra.mxu0 %v848
        %v919 = vpop.f32.mrf.mxu0
        %v920 = vadd.f32 0.0, %v919
        %921 = vmatmul.f32.gmra.mxu0 %v850
        %v922 = vpop.f32.mrf.mxu0
        %v923 = vadd.f32 0.0, %v922
        %924 = vmatmul.f32.gmra.mxu0 %v852
        %v925 = vpop.f32.mrf.mxu0
        %v926 = vadd.f32 0.0, %v925
        %927 = vmatmul.f32.gmra.mxu0 %v854
        %v928 = vpop.f32.mrf.mxu0
        %v929 = vadd.f32 0.0, %v928
        %930 = vmatmul.f32.gmra.mxu0 %v856
        %v931 = vpop.f32.mrf.mxu0
        %v932 = vadd.f32 0.0, %v931
        %933 = vmatmul.f32.gmra.mxu0 %v858
        %v934 = vpop.f32.mrf.mxu0
        %v935 = vadd.f32 0.0, %v934
        %936 = vmatmul.f32.gmra.mxu0 %v860
        %v937 = vpop.f32.mrf.mxu0
        %v938 = vadd.f32 0.0, %v937
        %939 = vdwg.mxu0
        %940 = vmatpush.msra.mxu0 0.0
        %941 = vmatpush.msra.mxu0 0.0
        %942 = vmatpush.msra.mxu0 0.0
        %943 = vmatpush.msra.mxu0 0.0
        %944 = vmatpush.msra.mxu0 0.0
        %945 = vmatpush.msra.mxu0 0.0
        %946 = vmatpush.msra.mxu0 0.0
        %947 = vmatpush.msra.mxu0 0.0
        %948 = vmatpush.msra.mxu0 0.0
        %949 = vmatpush.msra.mxu0 0.0
        %950 = vmatpush.msra.mxu0 0.0
        %951 = vmatpush.msra.mxu0 0.0
        %952 = vmatpush.msra.mxu0 0.0
        %953 = vmatpush.msra.mxu0 %v519
        %954 = vmatpush.msra.mxu0 %v816
        %955 = vmatpush.msra.mxu0 %v814
        %956 = vmatmul.f32.gmra.mxu0 %v864
        %v957 = vpop.f32.mrf.mxu0
        %v958 = vadd.f32 %v911, %v957
        %959 = vmatmul.f32.gmra.mxu0 %v867
        %v960 = vpop.f32.mrf.mxu0
        %v961 = vadd.f32 %v914, %v960
        %962 = vmatmul.f32.gmra.mxu0 %v870
        %v963 = vpop.f32.mrf.mxu0
        %v964 = vadd.f32 %v917, %v963
        %965 = vmatmul.f32.gmra.mxu0 %v873
        %v966 = vpop.f32.mrf.mxu0
        %v967 = vadd.f32 %v920, %v966
        %968 = vmatmul.f32.gmra.mxu0 %v876
        %v969 = vpop.f32.mrf.mxu0
        %v970 = vadd.f32 %v923, %v969
        %971 = vmatmul.f32.gmra.mxu0 %v879
        %v972 = vpop.f32.mrf.mxu0
        %v973 = vadd.f32 %v926, %v972
        %974 = vmatmul.f32.gmra.mxu0 %v882
        %v975 = vpop.f32.mrf.mxu0
        %v976 = vadd.f32 %v929, %v975
        %977 = vmatmul.f32.gmra.mxu0 %v885
        %v978 = vpop.f32.mrf.mxu0
        %v979 = vadd.f32 %v932, %v978
        %980 = vmatmul.f32.gmra.mxu0 %v888
        %v981 = vpop.f32.mrf.mxu0
        %v982 = vadd.f32 %v935, %v981
        %983 = vmatmul.f32.gmra.mxu0 %v891
        %v984 = vpop.f32.mrf.mxu0
        %v985 = vadd.f32 %v938, %v984
        %986 = vdwg.mxu0
        %987 = vmatpush.msra.mxu0 %v813
        %988 = vmatpush.msra.mxu0 %v811
        %989 = vmatpush.msra.mxu0 %v809
        %990 = vmatpush.msra.mxu0 %v807
        %991 = vmatpush.msra.mxu0 %v678
        %992 = vmatpush.msra.mxu0 %v675
        %993 = vmatpush.msra.mxu0 %v672
        %994 = vmatpush.msra.mxu0 %v669
        %995 = vmatpush.msra.mxu0 %v666
        %996 = vmatpush.msra.mxu0 %v663
        %997 = vmatpush.msra.mxu0 %v744
        %998 = vmatpush.msra.mxu0 %v742
        %999 = vmatpush.msra.mxu0 %v740
        %1000 = vmatpush.msra.mxu0 %v738
        %1001 = vmatpush.msra.mxu0 %v736
        %1002 = vmatpush.msra.mxu0 %v734
        %1003 = vmatmul.f32.gmra.mxu0 %v842
        %v1004 = vpop.f32.mrf.mxu0
        %v1005 = vadd.f32 0.0, %v1004
        %1006 = vmatmul.f32.gmra.mxu0 %v844
        %v1007 = vpop.f32.mrf.mxu0
        %v1008 = vadd.f32 0.0, %v1007
        %1009 = vmatmul.f32.gmra.mxu0 %v846
        %v1010 = vpop.f32.mrf.mxu0
        %v1011 = vadd.f32 0.0, %v1010
        %1012 = vmatmul.f32.gmra.mxu0 %v848
        %v1013 = vpop.f32.mrf.mxu0
        %v1014 = vadd.f32 0.0, %v1013
        %1015 = vmatmul.f32.gmra.mxu0 %v850
        %v1016 = vpop.f32.mrf.mxu0
        %v1017 = vadd.f32 0.0, %v1016
        %1018 = vmatmul.f32.gmra.mxu0 %v852
        %v1019 = vpop.f32.mrf.mxu0
        %v1020 = vadd.f32 0.0, %v1019
        %1021 = vmatmul.f32.gmra.mxu0 %v854
        %v1022 = vpop.f32.mrf.mxu0
        %v1023 = vadd.f32 0.0, %v1022
        %1024 = vmatmul.f32.gmra.mxu0 %v856
        %v1025 = vpop.f32.mrf.mxu0
        %v1026 = vadd.f32 0.0, %v1025
        %1027 = vmatmul.f32.gmra.mxu0 %v858
        %v1028 = vpop.f32.mrf.mxu0
        %v1029 = vadd.f32 0.0, %v1028
        %1030 = vmatmul.f32.gmra.mxu0 %v860
        %v1031 = vpop.f32.mrf.mxu0
        %v1032 = vadd.f32 0.0, %v1031
        %1033 = vdwg.mxu0
        %1034 = vmatpush.msra.mxu0 0.0
        %1035 = vmatpush.msra.mxu0 0.0
        %1036 = vmatpush.msra.mxu0 0.0
        %1037 = vmatpush.msra.mxu0 0.0
        %1038 = vmatpush.msra.mxu0 0.0
        %1039 = vmatpush.msra.mxu0 0.0
        %1040 = vmatpush.msra.mxu0 0.0
        %1041 = vmatpush.msra.mxu0 0.0
        %1042 = vmatpush.msra.mxu0 0.0
        %1043 = vmatpush.msra.mxu0 0.0
        %1044 = vmatpush.msra.mxu0 0.0
        %1045 = vmatpush.msra.mxu0 0.0
        %1046 = vmatpush.msra.mxu0 0.0
        %1047 = vmatpush.msra.mxu0 %v519
        %1048 = vmatpush.msra.mxu0 %v817
        %1049 = vmatpush.msra.mxu0 %v815
        %1050 = vmatmul.f32.gmra.mxu0 %v864
        %v1051 = vpop.f32.mrf.mxu0
        %v1052 = vadd.f32 %v1005, %v1051
        %1053 = vmatmul.f32.gmra.mxu0 %v867
        %v1054 = vpop.f32.mrf.mxu0
        %v1055 = vadd.f32 %v1008, %v1054
        %1056 = vmatmul.f32.gmra.mxu0 %v870
        %v1057 = vpop.f32.mrf.mxu0
        %v1058 = vadd.f32 %v1011, %v1057
        %1059 = vmatmul.f32.gmra.mxu0 %v873
        %v1060 = vpop.f32.mrf.mxu0
        %v1061 = vadd.f32 %v1014, %v1060
        %1062 = vmatmul.f32.gmra.mxu0 %v876
        %v1063 = vpop.f32.mrf.mxu0
        %v1064 = vadd.f32 %v1017, %v1063
        %1065 = vmatmul.f32.gmra.mxu0 %v879
        %v1066 = vpop.f32.mrf.mxu0
        %v1067 = vadd.f32 %v1020, %v1066
        %1068 = vmatmul.f32.gmra.mxu0 %v882
        %v1069 = vpop.f32.mrf.mxu0
        %v1070 = vadd.f32 %v1023, %v1069
        %1071 = vmatmul.f32.gmra.mxu0 %v885
        %v1072 = vpop.f32.mrf.mxu0
        %v1073 = vadd.f32 %v1026, %v1072
        %1074 = vmatmul.f32.gmra.mxu0 %v888
        %v1075 = vpop.f32.mrf.mxu0
        %v1076 = vadd.f32 %v1029, %v1075
        %1077 = vmatmul.f32.gmra.mxu0 %v891
        %v1078 = vpop.f32.mrf.mxu0
        %v1079 = vadd.f32 %v1032, %v1078
        %1080 = vdwg.mxu0
        %1081 = vmatpush.msra.mxu0 %v839
        %1082 = vmatpush.msra.mxu0 %v838
        %1083 = vmatpush.msra.mxu0 %v837
        %1084 = vmatpush.msra.mxu0 %v836
        %1085 = vmatpush.msra.mxu0 %v679
        %1086 = vmatpush.msra.mxu0 %v676
        %1087 = vmatpush.msra.mxu0 %v673
        %1088 = vmatpush.msra.mxu0 %v670
        %1089 = vmatpush.msra.mxu0 %v667
        %1090 = vmatpush.msra.mxu0 %v664
        %1091 = vmatpush.msra.mxu0 %v745
        %1092 = vmatpush.msra.mxu0 %v743
        %1093 = vmatpush.msra.mxu0 %v741
        %1094 = vmatpush.msra.mxu0 %v739
        %1095 = vmatpush.msra.mxu0 %v737
        %1096 = vmatpush.msra.mxu0 %v735
        %1097 = vmatmul.f32.gmra.mxu0 %v842
        %v1098 = vpop.f32.mrf.mxu0
        %v1099 = vadd.f32 0.0, %v1098
        %1100 = vmatmul.f32.gmra.mxu0 %v844
        %v1101 = vpop.f32.mrf.mxu0
        %v1102 = vadd.f32 0.0, %v1101
        %1103 = vmatmul.f32.gmra.mxu0 %v846
        %v1104 = vpop.f32.mrf.mxu0
        %v1105 = vadd.f32 0.0, %v1104
        %1106 = vmatmul.f32.gmra.mxu0 %v848
        %v1107 = vpop.f32.mrf.mxu0
        %v1108 = vadd.f32 0.0, %v1107
        %1109 = vmatmul.f32.gmra.mxu0 %v850
        %v1110 = vpop.f32.mrf.mxu0
        %v1111 = vadd.f32 0.0, %v1110
        %1112 = vmatmul.f32.gmra.mxu0 %v852
        %v1113 = vpop.f32.mrf.mxu0
        %v1114 = vadd.f32 0.0, %v1113
        %1115 = vmatmul.f32.gmra.mxu0 %v854
        %v1116 = vpop.f32.mrf.mxu0
        %v1117 = vadd.f32 0.0, %v1116
        %1118 = vmatmul.f32.gmra.mxu0 %v856
        %v1119 = vpop.f32.mrf.mxu0
        %v1120 = vadd.f32 0.0, %v1119
        %1121 = vmatmul.f32.gmra.mxu0 %v858
        %v1122 = vpop.f32.mrf.mxu0
        %v1123 = vadd.f32 0.0, %v1122
        %1124 = vmatmul.f32.gmra.mxu0 %v860
        %v1125 = vpop.f32.mrf.mxu0
        %v1126 = vadd.f32 0.0, %v1125
        %1127 = vdwg.mxu0
        %1128 = vmatpush.msra.mxu0 0.0
        %1129 = vmatpush.msra.mxu0 0.0
        %1130 = vmatpush.msra.mxu0 0.0
        %1131 = vmatpush.msra.mxu0 0.0
        %1132 = vmatpush.msra.mxu0 0.0
        %1133 = vmatpush.msra.mxu0 0.0
        %1134 = vmatpush.msra.mxu0 0.0
        %1135 = vmatpush.msra.mxu0 0.0
        %1136 = vmatpush.msra.mxu0 0.0
        %1137 = vmatpush.msra.mxu0 0.0
        %1138 = vmatpush.msra.mxu0 0.0
        %1139 = vmatpush.msra.mxu0 0.0
        %1140 = vmatpush.msra.mxu0 0.0
        %1141 = vmatpush.msra.mxu0 %v519
        %1142 = vmatpush.msra.mxu0 %v841
        %1143 = vmatpush.msra.mxu0 %v840
        %1144 = vmatmul.f32.gmra.mxu0 %v864
        %v1145 = vpop.f32.mrf.mxu0
        %v1146 = vadd.f32 %v1099, %v1145
        %1147 = vmatmul.f32.gmra.mxu0 %v867
        %v1148 = vpop.f32.mrf.mxu0
        %v1149 = vadd.f32 %v1102, %v1148
        %1150 = vmatmul.f32.gmra.mxu0 %v870
        %v1151 = vpop.f32.mrf.mxu0
        %v1152 = vadd.f32 %v1105, %v1151
        %1153 = vmatmul.f32.gmra.mxu0 %v873
        %v1154 = vpop.f32.mrf.mxu0
        %v1155 = vadd.f32 %v1108, %v1154
        %1156 = vmatmul.f32.gmra.mxu0 %v876
        %v1157 = vpop.f32.mrf.mxu0
        %v1158 = vadd.f32 %v1111, %v1157
        %1159 = vmatmul.f32.gmra.mxu0 %v879
        %v1160 = vpop.f32.mrf.mxu0
        %v1161 = vadd.f32 %v1114, %v1160
        %1162 = vmatmul.f32.gmra.mxu0 %v882
        %v1163 = vpop.f32.mrf.mxu0
        %v1164 = vadd.f32 %v1117, %v1163
        %1165 = vmatmul.f32.gmra.mxu0 %v885
        %v1166 = vpop.f32.mrf.mxu0
        %v1167 = vadd.f32 %v1120, %v1166
        %1168 = vmatmul.f32.gmra.mxu0 %v888
        %v1169 = vpop.f32.mrf.mxu0
        %v1170 = vadd.f32 %v1123, %v1169
        %1171 = vmatmul.f32.gmra.mxu0 %v891
        %v1172 = vpop.f32.mrf.mxu0
        %v1173 = vadd.f32 %v1126, %v1172
        %1174 = vdwg.mxu0
        %v1175 = vmul.f32 %v958, 0.4
        %v1176 = vmul.f32 %v1052, 0.4
        %v1177 = vmul.f32 %v1146, 0.4
        %v1178 = vmul.f32 %v961, 0.4
        %v1179 = vmul.f32 %v1055, 0.4
        %v1180 = vmul.f32 %v1149, 0.4
        %v1181 = vmul.f32 %v964, 0.4
        %v1182 = vmul.f32 %v1058, 0.4
        %v1183 = vmul.f32 %v1152, 0.4
        %v1184 = vmul.f32 %v967, 0.4
        %v1185 = vmul.f32 %v1061, 0.4
        %v1186 = vmul.f32 %v1155, 0.4
        %v1187 = vmul.f32 %v970, 0.4
        %v1188 = vmul.f32 %v1064, 0.4
        %v1189 = vmul.f32 %v1158, 0.4
        %v1190 = vmul.f32 %v973, 0.4
        %v1191 = vmul.f32 %v1067, 0.4
        %v1192 = vmul.f32 %v1161, 0.4
        %v1193 = vmul.f32 %v976, 0.4
        %v1194 = vmul.f32 %v1070, 0.4
        %v1195 = vmul.f32 %v1164, 0.4
        %v1196 = vmul.f32 %v979, 0.4
        %v1197 = vmul.f32 %v1073, 0.4
        %v1198 = vmul.f32 %v1167, 0.4
        %v1199 = vmul.f32 %v982, 0.4
        %v1200 = vmul.f32 %v1076, 0.4
        %v1201 = vmul.f32 %v1170, 0.4
        %v1202 = vmul.f32 %v985, 0.4
        %v1203 = vmul.f32 %v1079, 0.4
        %v1204 = vmul.f32 %v1173, 0.4
        %v1205 = vmax.f32 %v958, %v1175
        %v1206 = vmax.f32 %v1052, %v1176
        %v1207 = vmax.f32 %v1146, %v1177
        %v1208 = vmax.f32 %v961, %v1178
        %v1209 = vmax.f32 %v1055, %v1179
        %v1210 = vmax.f32 %v1149, %v1180
        %v1211 = vmax.f32 %v964, %v1181
        %v1212 = vmax.f32 %v1058, %v1182
        %v1213 = vmax.f32 %v1152, %v1183
        %v1214 = vmax.f32 %v967, %v1184
        %v1215 = vmax.f32 %v1061, %v1185
        %v1216 = vmax.f32 %v1155, %v1186
        %v1217 = vmax.f32 %v970, %v1187
        %v1218 = vmax.f32 %v1064, %v1188
        %v1219 = vmax.f32 %v1158, %v1189
        %v1220 = vmax.f32 %v973, %v1190
        %v1221 = vmax.f32 %v1067, %v1191
        %v1222 = vmax.f32 %v1161, %v1192
        %v1223 = vmax.f32 %v976, %v1193
        %v1224 = vmax.f32 %v1070, %v1194
        %v1225 = vmax.f32 %v1164, %v1195
        %v1226 = vmax.f32 %v979, %v1196
        %v1227 = vmax.f32 %v1073, %v1197
        %v1228 = vmax.f32 %v1167, %v1198
        %v1229 = vmax.f32 %v982, %v1199
        %v1230 = vmax.f32 %v1076, %v1200
        %v1231 = vmax.f32 %v1170, %v1201
        %v1232 = vmax.f32 %v985, %v1202
        %v1233 = vmax.f32 %v1079, %v1203
        %v1234 = vmax.f32 %v1173, %v1204
        %v1235 = vmul.f32 %v1205, %v433
        %v1236 = vmul.f32 %v1206, %v434
        %v1237 = vmul.f32 %v1207, %v435
        %v1238 = vmul.f32 %v1208, %v433
        %v1239 = vmul.f32 %v1209, %v434
        %v1240 = vmul.f32 %v1210, %v435
        %v1241 = vmul.f32 %v1211, %v433
        %v1242 = vmul.f32 %v1212, %v434
        %v1243 = vmul.f32 %v1213, %v435
        %v1244 = vmul.f32 %v1214, %v433
        %v1245 = vmul.f32 %v1215, %v434
        %v1246 = vmul.f32 %v1216, %v435
        %v1247 = vmul.f32 %v1217, %v433
        %v1248 = vmul.f32 %v1218, %v434
        %v1249 = vmul.f32 %v1219, %v435
        %v1250 = vmul.f32 %v1220, %v433
        %v1251 = vmul.f32 %v1221, %v434
        %v1252 = vmul.f32 %v1222, %v435
        %v1253 = vmul.f32 %v1223, %v433
        %v1254 = vmul.f32 %v1224, %v434
        %v1255 = vmul.f32 %v1225, %v435
        %v1256 = vmul.f32 %v1226, %v433
        %v1257 = vmul.f32 %v1227, %v434
        %v1258 = vmul.f32 %v1228, %v435
        %v1259 = vmul.f32 %v1229, %v433
        %v1260 = vmul.f32 %v1230, %v434
        %v1261 = vmul.f32 %v1231, %v435
        %v1262 = vmul.f32 %v1232, %v433
        %v1263 = vmul.f32 %v1233, %v434
        %v1264 = vmul.f32 %v1234, %v435
        %1285 = vrot.lane.b32.xlu0 %v1235, 1
        %v1286 = vpop.permute.xlu0 %1285
        %1287 = vrot.lane.b32.xlu0 %v1236, 1
        %v1288 = vpop.permute.xlu0 %1287
        %1289 = vrot.lane.b32.xlu0 %v1238, 1
        %v1290 = vpop.permute.xlu0 %1289
        %1291 = vrot.lane.b32.xlu0 %v1239, 1
        %v1292 = vpop.permute.xlu0 %1291
        %1293 = vrot.lane.b32.xlu0 %v1241, 1
        %v1294 = vpop.permute.xlu0 %1293
        %1295 = vrot.lane.b32.xlu0 %v1242, 1
        %v1296 = vpop.permute.xlu0 %1295
        %1297 = vrot.lane.b32.xlu0 %v1244, 1
        %v1298 = vpop.permute.xlu0 %1297
        %1299 = vrot.lane.b32.xlu0 %v1245, 1
        %v1300 = vpop.permute.xlu0 %1299
        %1301 = vrot.lane.b32.xlu0 %v1247, 1
        %v1302 = vpop.permute.xlu0 %1301
        %1303 = vrot.lane.b32.xlu0 %v1248, 1
        %v1304 = vpop.permute.xlu0 %1303
        %1305 = vrot.lane.b32.xlu0 %v1250, 1
        %v1306 = vpop.permute.xlu0 %1305
        %1307 = vrot.lane.b32.xlu0 %v1251, 1
        %v1308 = vpop.permute.xlu0 %1307
        %1309 = vrot.lane.b32.xlu0 %v1253, 1
        %v1310 = vpop.permute.xlu0 %1309
        %1311 = vrot.lane.b32.xlu0 %v1254, 1
        %v1312 = vpop.permute.xlu0 %1311
        %1313 = vrot.lane.b32.xlu0 %v1256, 1
        %v1314 = vpop.permute.xlu0 %1313
        %1315 = vrot.lane.b32.xlu0 %v1257, 1
        %v1316 = vpop.permute.xlu0 %1315
        %1317 = vrot.lane.b32.xlu0 %v1259, 1
        %v1318 = vpop.permute.xlu0 %1317
        %1319 = vrot.lane.b32.xlu0 %v1260, 1
        %v1320 = vpop.permute.xlu0 %1319
        %1321 = vrot.lane.b32.xlu0 %v1262, 1
        %v1322 = vpop.permute.xlu0 %1321
        %1323 = vrot.lane.b32.xlu0 %v1263, 1
        %v1324 = vpop.permute.xlu0 %1323
        %v1325 = vsel %vm454, %v1286, %v1288
        %v1326 = vsel %vm454, %v1290, %v1292
        %v1327 = vsel %vm454, %v1294, %v1296
        %v1328 = vsel %vm454, %v1298, %v1300
        %v1329 = vsel %vm454, %v1302, %v1304
        %v1330 = vsel %vm454, %v1306, %v1308
        %v1331 = vsel %vm454, %v1310, %v1312
        %v1332 = vsel %vm454, %v1314, %v1316
        %v1333 = vsel %vm454, %v1318, %v1320
        %v1334 = vsel %vm454, %v1322, %v1324
        %1355 = vrot.lane.b32.xlu0 %v1236, 127
        %v1356 = vpop.permute.xlu0 %1355
        %1357 = vrot.lane.b32.xlu0 %v1237, 127
        %v1358 = vpop.permute.xlu0 %1357
        %1359 = vrot.lane.b32.xlu0 %v1239, 127
        %v1360 = vpop.permute.xlu0 %1359
        %1361 = vrot.lane.b32.xlu0 %v1240, 127
        %v1362 = vpop.permute.xlu0 %1361
        %1363 = vrot.lane.b32.xlu0 %v1242, 127
        %v1364 = vpop.permute.xlu0 %1363
        %1365 = vrot.lane.b32.xlu0 %v1243, 127
        %v1366 = vpop.permute.xlu0 %1365
        %1367 = vrot.lane.b32.xlu0 %v1245, 127
        %v1368 = vpop.permute.xlu0 %1367
        %1369 = vrot.lane.b32.xlu0 %v1246, 127
        %v1370 = vpop.permute.xlu0 %1369
        %1371 = vrot.lane.b32.xlu0 %v1248, 127
        %v1372 = vpop.permute.xlu0 %1371
        %1373 = vrot.lane.b32.xlu0 %v1249, 127
        %v1374 = vpop.permute.xlu0 %1373
        %1375 = vrot.lane.b32.xlu0 %v1251, 127
        %v1376 = vpop.permute.xlu0 %1375
        %1377 = vrot.lane.b32.xlu0 %v1252, 127
        %v1378 = vpop.permute.xlu0 %1377
        %1379 = vrot.lane.b32.xlu0 %v1254, 127
        %v1380 = vpop.permute.xlu0 %1379
        %1381 = vrot.lane.b32.xlu0 %v1255, 127
        %v1382 = vpop.permute.xlu0 %1381
        %1383 = vrot.lane.b32.xlu0 %v1257, 127
        %v1384 = vpop.permute.xlu0 %1383
        %1385 = vrot.lane.b32.xlu0 %v1258, 127
        %v1386 = vpop.permute.xlu0 %1385
        %1387 = vrot.lane.b32.xlu0 %v1260, 127
        %v1388 = vpop.permute.xlu0 %1387
        %1389 = vrot.lane.b32.xlu0 %v1261, 127
        %v1390 = vpop.permute.xlu0 %1389
        %1391 = vrot.lane.b32.xlu0 %v1263, 127
        %v1392 = vpop.permute.xlu0 %1391
        %1393 = vrot.lane.b32.xlu0 %v1264, 127
        %v1394 = vpop.permute.xlu0 %1393
        %v1395 = vsel %vm479, %v1356, %v1358
        %v1396 = vsel %vm479, %v1360, %v1362
        %v1397 = vsel %vm479, %v1364, %v1366
        %v1398 = vsel %vm479, %v1368, %v1370
        %v1399 = vsel %vm479, %v1372, %v1374
        %v1400 = vsel %vm479, %v1376, %v1378
        %v1401 = vsel %vm479, %v1380, %v1382
        %v1402 = vsel %vm479, %v1384, %v1386
        %v1403 = vsel %vm479, %v1388, %v1390
        %v1404 = vsel %vm479, %v1392, %v1394
        %v1415 = vld [vmem:[%s5] sm:$0xff]
        %v1416 = vld [vmem:[%s5 + $0x8] sm:$0xff]
        %v1417 = vld [vmem:[%s5 + $0x10] sm:$0xff]
        %v1418 = vld [vmem:[%s5 + $0x18] sm:$0xff]
        %v1419 = vld [vmem:[%s5 + $0x20] sm:$0xff]
        %v1420 = vld [vmem:[%s5 + $0x28] sm:$0xff]
        %v1421 = vld [vmem:[%s5 + $0x30] sm:$0xff]
        %v1422 = vld [vmem:[%s5 + $0x38] sm:$0xff]
        %vm1423 = vcmask 924672
        %v1425 = vsel %vm1423, %v1416, 0
        %v1428 = vsel %vm1423, %v1418, 0
        %v1431 = vsel %vm1423, %v1420, 0
        %v1434 = vsel %vm1423, %v1422, 0
        %1436 = vmatpush.msra.mxu0 %v1251
        %1437 = vmatpush.msra.mxu0 %v1248
        %1438 = vmatpush.msra.mxu0 %v1245
        %1439 = vmatpush.msra.mxu0 %v1242
        %1440 = vmatpush.msra.mxu0 %v1239
        %1441 = vmatpush.msra.mxu0 %v1236
        %1442 = vmatpush.msra.mxu0 %v1334
        %1443 = vmatpush.msra.mxu0 %v1333
        %1444 = vmatpush.msra.mxu0 %v1332
        %1445 = vmatpush.msra.mxu0 %v1331
        %1446 = vmatpush.msra.mxu0 %v1330
        %1447 = vmatpush.msra.mxu0 %v1329
        %1448 = vmatpush.msra.mxu0 %v1328
        %1449 = vmatpush.msra.mxu0 %v1327
        %1450 = vmatpush.msra.mxu0 %v1326
        %1451 = vmatpush.msra.mxu0 %v1325
        %1452 = vmatmul.f32.gmra.mxu0 %v1415
        %v1453 = vpop.f32.mrf.mxu0
        %v1454 = vadd.f32 0.0, %v1453
        %1455 = vmatmul.f32.gmra.mxu0 %v1417
        %v1456 = vpop.f32.mrf.mxu0
        %v1457 = vadd.f32 0.0, %v1456
        %1458 = vmatmul.f32.gmra.mxu0 %v1419
        %v1459 = vpop.f32.mrf.mxu0
        %v1460 = vadd.f32 0.0, %v1459
        %1461 = vmatmul.f32.gmra.mxu0 %v1421
        %v1462 = vpop.f32.mrf.mxu0
        %v1463 = vadd.f32 0.0, %v1462
        %1464 = vdwg.mxu0
        %1465 = vmatpush.msra.mxu0 0.0
        %1466 = vmatpush.msra.mxu0 %v519
        %1467 = vmatpush.msra.mxu0 %v1404
        %1468 = vmatpush.msra.mxu0 %v1403
        %1469 = vmatpush.msra.mxu0 %v1402
        %1470 = vmatpush.msra.mxu0 %v1401
        %1471 = vmatpush.msra.mxu0 %v1400
        %1472 = vmatpush.msra.mxu0 %v1399
        %1473 = vmatpush.msra.mxu0 %v1398
        %1474 = vmatpush.msra.mxu0 %v1397
        %1475 = vmatpush.msra.mxu0 %v1396
        %1476 = vmatpush.msra.mxu0 %v1395
        %1477 = vmatpush.msra.mxu0 %v1263
        %1478 = vmatpush.msra.mxu0 %v1260
        %1479 = vmatpush.msra.mxu0 %v1257
        %1480 = vmatpush.msra.mxu0 %v1254
        %1481 = vmatmul.f32.gmra.mxu0 %v1425
        %v1482 = vpop.f32.mrf.mxu0
        %v1483 = vadd.f32 %v1454, %v1482
        %1484 = vmatmul.f32.gmra.mxu0 %v1428
        %v1485 = vpop.f32.mrf.mxu0
        %v1486 = vadd.f32 %v1457, %v1485
        %1487 = vmatmul.f32.gmra.mxu0 %v1431
        %v1488 = vpop.f32.mrf.mxu0
        %v1489 = vadd.f32 %v1460, %v1488
        %1490 = vmatmul.f32.gmra.mxu0 %v1434
        %v1491 = vpop.f32.mrf.mxu0
        %v1492 = vadd.f32 %v1463, %v1491
        %1493 = vdwg.mxu0
        %v1494 = vmul.f32 %v1483, 0.4
        %v1495 = vmul.f32 %v1486, 0.4
        %v1496 = vmul.f32 %v1489, 0.4
        %v1497 = vmul.f32 %v1492, 0.4
        %v1498 = vmax.f32 %v1483, %v1494
        %v1499 = vmax.f32 %v1486, %v1495
        %v1500 = vmax.f32 %v1489, %v1496
        %v1501 = vmax.f32 %v1492, %v1497
        %1502 = vst [vmem:[%s402] sm:$0xff] %v1498
        %1503 = vst [vmem:[%s402 + $0x8] sm:$0xff] %v1499
        %1504 = vst [vmem:[%s402 + $0x10] sm:$0xff] %v1500
        %1505 = vst [vmem:[%s402 + $0x18] sm:$0xff] %v1501
        %s1506 = sand.u32 %s199, 1
        %s1507 = scalar_lea.sflag [#allocation5], %s1506
        %s1508 = sand.u32 %s199, 1
        %s1509 = smul.addr %s1508, 32
        %s1510 = scalar_lea.vmem [#allocation8], %s1509
        // Predicated region
        $region91: #{tpu_custom_call.1} parent=77 // pred_check
          %p1511 = pneg %p209
        $region92: #{tpu_custom_call.1} parent=77 // pred_check_branch
          %1513 = sbr.rel (%p1511) target = $region94
        $region93: #{tpu_custom_call.1} parent=77 // pred_region
          %1515 = vsyncadd %s1507, 0
          %s1516 = smul.addr %s30, 16
          %s1517 = sadd.s32 %s31, %s1516
          %s1518 = smul.addr %s1517, 8
          %s1519 = scalar_lea.hbm %s6, %s1518
          %s1520 = sshll.u32 %s1510, 4
          %s1521 = int_to_ptr.vmem [resolvable:$true] %s1520
          %s1522 = sshll.u32 %s1519, 4
          %s1523 = int_to_ptr.hbm [resolvable:$true] %s1522
          %1528 = dma.vmem_to_hbm [thread:$0]  %s1521, 512, %s1523, %s1507, 128, 512, 8
        $region94: #{tpu_custom_call.1} parent=77 // pred_fallthru
          _
      $region78: #{tpu_custom_call.1} parent=5 // pred_fallthru
        _
      %p1529 = scmp.le.s32.totalorder 2, %s21
      // Predicated region
      $region95: #{tpu_custom_call.1} parent=5 // pred_check
        %p1530 = pneg %p1529
      $region96: #{tpu_custom_call.1} parent=5 // pred_check_branch
        %1532 = sbr.rel (%p1530) target = $region98
      $region97: #{tpu_custom_call.1} parent=5 // pred_region
        %s1533 = ssub.s32 %s21, 2
        // Predicated region
        $region99: #{tpu_custom_call.1} parent=97 // pred_check
          %p1534 = pneg %p215
        $region100: #{tpu_custom_call.1} parent=97 // pred_check_branch
          %1536 = sbr.rel (%p1534) target = $region102
        $region101: #{tpu_custom_call.1} parent=97 // pred_region
          %s1537 = sand.u32 %s200, 1
          %s1538 = scalar_lea.sflag [#allocation5], %s1537
          %s1539 = sand.u32 %s200, 1
          %s1540 = smul.addr %s1539, 32
          %s1541 = scalar_lea.vmem [#allocation8], %s1540
          %1543 = dma.done %s1538, 512
        $region102: #{tpu_custom_call.1} parent=97 // pred_fallthru
          _
      $region98: #{tpu_custom_call.1} parent=5 // pred_fallthru
        _
    $region6: #{tpu_custom_call.1} parent=1 // loop_footer
      %s25 = sadd.s32 1, %s21
    $region7: #{tpu_custom_call.1} parent=1 // loop_footer_branch
      %20 = sbr.rel target = $region3
    $region8: #{tpu_custom_call.1} parent=1 // loop_exit
      _
    %1544 = vsyncpa [#allocation4], 1
    %s1545 = scalar_lea.sflag [#allocation4], 1
    %1546 = vsyncpa %s1545, 1
    %1547 = vsyncpa [#allocation7], 1
    %s1548 = scalar_lea.sflag [#allocation7], 1
    %1549 = vsyncpa %s1548, 1
    %1550 = vsyncpa [#allocation5], 1
    %s1551 = scalar_lea.sflag [#allocation5], 1
    %1552 = vsyncpa %s1551, 1

</llo_original>
